<compile_context>
chip_gen: v7x
topology: tpu7x:2x2x1
jax: 0.10.0
libtpu: 0.0.40
codegen_flags: <defaults>
</compile_context>

<pallas_src>
import jax
import jax.numpy as jnp
from jax import lax
from jax.experimental import pallas as pl
from jax.experimental.pallas import tpu as pltpu


# ----------------------------------------------------------------------------
# Generation-aware VMEM limit and tile-height selection
# ----------------------------------------------------------------------------
def _vmem_limit_bytes(default=48 * 1024 * 1024):
    """Scoped-VMEM limit: ~96 MiB on 128-MiB v5e/v6e, ~40 MiB on 64-MiB v7x."""
    try:
        cap = getattr(pltpu.get_tpu_info(), "vmem_capacity_bytes", None)
    except Exception:  # query unavailable -> conservative, known-good default
        cap = None
    if not cap:
        return default
    if cap >= 96 * 1024 * 1024:       # v5e / v6e (128 MiB physical per core)
        return 96 * 1024 * 1024
    return min(40 * 1024 * 1024, (cap * 5) // 8)   # v7x (64 MiB physical)


def _pick_tile_h(H, W, Cin, Cout, n_batch, fuse_pool, in_bytes, out_bytes,
                 vmem_limit, tile_h_max):
    """Largest TH dividing H s.t. double-buffered blocks + im2col intermediates
    fit ~half the VMEM limit; even when pooling is fused; and >=2 grid units
    remain when batch==1 (keeps both v7x TensorCores busy)."""
    per_row = W * (Cin * (2 * in_bytes + 2 + 36)       # x (dbl-buf) + xpf + taps/cols (bf16)
                   + Cout * (8 + 2 * out_bytes))       # acc/y (f32) + out tile (dbl-buf)
    if fuse_pool:
        per_row += W * Cout * 6                        # pool scratch + pooled out
    fixed = 4 * W * Cin * in_bytes + 36 * Cin * Cout + (64 << 10)
    budget = max(vmem_limit // 2 - fixed, per_row)
    cap = max(min(budget // per_row, tile_h_max, H), 1)
    if n_batch == 1 and H >= 2:
        cap = min(cap, H // 2)                         # >=2 parallel grid units
    cap = int(cap)
    for t in range(cap, 0, -1):
        if H % t == 0 and (not fuse_pool or t % 2 == 0):
            return t
    return 2 if fuse_pool else 1


# ----------------------------------------------------------------------------
# Conv 3x3 (stride 1, SAME) + LeakyReLU(0.2) [+ fused 2x2 avg-pool] kernel
# ----------------------------------------------------------------------------
def _make_conv_kernel(TH, W, Cin, Cout, fuse_pool):
    def kernel(x_ref, top_ref, bot_ref, w_ref, b_ref, *rest):
        # x_ref:   (1, TH, W, Cin)  main row-tile (f32 or bf16)
        # top_ref: (1, 1,  W, Cin)  row above the tile (clamped at border)
        # bot_ref: (1, 1,  W, Cin)  row below the tile (clamped at border)
        # w_ref:   (9*Cin, Cout)    bf16, index = dy*3*Cin + dx*Cin + c
        # b_ref:   (1, Cout)        f32
        if fuse_pool:
            o_ref, p_ref, pool_buf = rest
        else:
            (o_ref,) = rest
        i = pl.program_id(1)
        cdt = jnp.bfloat16

        # Halo rows; zero them at the top/bottom image border (SAME pad in H).
        top = top_ref[0, 0]
        bot = bot_ref[0, 0]
        top = top * jnp.where(i > 0, 1.0, 0.0).astype(top.dtype)
        bot = bot * jnp.where(i < pl.num_programs(1) - 1, 1.0, 0.0).astype(bot.dtype)

        # One flattened, 1-element-padded buffer over (row, col): every 3x3 tap
        # is then a *contiguous* window of it -> single K=9*Cin im2col matmul.
        zrow = jnp.zeros((1, Cin), cdt)
        xpf = jnp.concatenate(
            [zrow,
             top.astype(cdt),
             x_ref[0].astype(cdt).reshape(TH * W, Cin),
             bot.astype(cdt),
             zrow], axis=0)                              # ((TH+2)*W + 2, Cin)

        # SAME padding in W: dx=0 / dx=2 taps wrap across rows; mask those cols.
        wpos = lax.broadcasted_iota(jnp.int32, (TH * W, 1), 0) % W
        not_first = wpos > 0
        not_last = wpos < (W - 1)
        zero = jnp.zeros((), cdt)

        taps = []
        for dy in range(3):
            for dx in range(3):
                s = dy * W + dx
                win = xpf[s:s + TH * W]                  # contiguous window
                if dx == 0:
                    win = jnp.where(not_first, win, zero)
                elif dx == 2:
                    win = jnp.where(not_last, win, zero)
                taps.append(win)
        cols = jnp.concatenate(taps, axis=-1)            # (TH*W, 9*Cin) bf16

        # Single MXU matmul, f32 accumulation; epilogue stays in f32.
        acc = jnp.dot(cols, w_ref[...], preferred_element_type=jnp.float32)
        acc = acc + b_ref[...]                           # (1, Cout) broadcast
        y = jnp.where(acc >= 0.0, acc, 0.2 * acc)        # LeakyReLU(0.2)
        o_ref[...] = y.reshape(1, TH, W, Cout).astype(o_ref.dtype)

        if fuse_pool:
            # Fused 2x2 / stride-2 average pool while the tile is in VMEM.
            yr = y.reshape(TH // 2, 2, W, Cout)
            pool_buf[...] = yr[:, 0] + yr[:, 1]          # row pairs (leading dim)
            ev = pool_buf[:, pl.ds(0, W // 2, 2), :]     # strided sublane loads
            od = pool_buf[:, pl.ds(1, W // 2, 2), :]     # for the column pairs
            p = (0.25 * (ev + od)).astype(p_ref.dtype)
            p_ref[...] = p.reshape(1, TH // 2, W // 2, Cout)

    return kernel


def conv3x3_lrelu(x, w, b, *, fuse_pool=False, out_dtype=jnp.float32,
                  pool_dtype=jnp.bfloat16, tile_h=None):
    """3x3 SAME conv + LeakyReLU(0.2); optionally also emits the 2x2 avg-pooled map.

    x: (N, H, W, Cin), w: (3, 3, Cin, Cout) f32, b: (Cout,) f32.
    Returns y: (N, H, W, Cout) in `out_dtype`, plus pooled (N, H//2, W//2, Cout)
    in `pool_dtype` when fuse_pool=True.
    """
    N, H, W, Cin = x.shape
    assert w.shape[:3] == (3, 3, Cin), (w.shape, Cin)
    Cout = w.shape[-1]
    if fuse_pool:
        assert H % 2 == 0 and W % 2 == 0, (H, W)
    # NOTE: W being a multiple of 8 keeps the in-kernel reshapes relayout-free;
    # smaller W (deep pyramid levels) is still correct, just not optimal.

    vmem_limit = _vmem_limit_bytes()
    tile_h_max = tile_h if tile_h is not None else (
        64 if vmem_limit >= 80 * 1024 * 1024 else 32)
    out_bytes = jnp.dtype(out_dtype).itemsize
    TH = _pick_tile_h(H, W, Cin, Cout, N, fuse_pool, x.dtype.itemsize, out_bytes,
                      vmem_limit, tile_h_max)
    nH = H // TH

    # Weights folded to (9*Cin, Cout) bf16 (halves weight HBM traffic), f32 bias.
    w9 = w.reshape(9 * Cin, Cout).astype(jnp.bfloat16)
    b2 = b.reshape(1, Cout).astype(jnp.float32)

    in_specs = [
        # Main TH-row tile.
        pl.BlockSpec((1, TH, W, Cin), lambda n, i: (n, i, 0, 0)),
        # Single-row halos above / below (block size 1 => block index == row
        # index); clamped at the border, the kernel masks them to zero there.
        pl.BlockSpec((1, 1, W, Cin),
                     lambda n, i: (n, jnp.maximum(i * TH - 1, 0), 0, 0)),
        pl.BlockSpec((1, 1, W, Cin),
                     lambda n, i: (n, jnp.minimum(i * TH + TH, H - 1), 0, 0)),
        pl.BlockSpec((9 * Cin, Cout), lambda n, i: (0, 0)),
        pl.BlockSpec((1, Cout), lambda n, i: (0, 0)),
    ]
    out_shape = [jax.ShapeDtypeStruct((N, H, W, Cout), out_dtype)]
    out_specs = [pl.BlockSpec((1, TH, W, Cout), lambda n, i: (n, i, 0, 0))]
    scratch = []
    if fuse_pool:
        out_shape.append(jax.ShapeDtypeStruct((N, H // 2, W // 2, Cout), pool_dtype))
        out_specs.append(pl.BlockSpec((1, TH // 2, W // 2, Cout),
                                      lambda n, i: (n, i, 0, 0)))
        scratch.append(pltpu.VMEM((TH // 2, W, Cout), jnp.float32))

    fn = pl.pallas_call(
        _make_conv_kernel(TH, W, Cin, Cout, fuse_pool),
        out_shape=tuple(out_shape) if fuse_pool else out_shape[0],
        grid=(N, nH),
        in_specs=in_specs,
        out_specs=tuple(out_specs) if fuse_pool else out_specs[0],
        scratch_shapes=tuple(scratch),
        compiler_params=pltpu.CompilerParams(
            # Both grid axes write disjoint output blocks -> parallel; lets the
            # v7x megacore split batch and/or H-tiles across its 2 TensorCores.
            dimension_semantics=("parallel", "parallel"),
            vmem_limit_bytes=vmem_limit,
        ),
    )
    # Halo rows are extra views of the same activation array.
    return fn(x, x, x, w9, b2)


# ----------------------------------------------------------------------------
# SubTreeExtractor forward (pyramid of features)
# ----------------------------------------------------------------------------
def sub_tree_extractor(image, params, n, *, tile_h=None):
    """image: (N, H, W, 3) NHWC. params: list of (w, b), 2 convs per level.

    Inter-level 'head' activations are bf16; pyramid outputs are f32.
    """
    head = image
    pyramid = []
    for i in range(n):
        w1, b1 = params[2 * i]
        w2, b2 = params[2 * i + 1]
        head = conv3x3_lrelu(head, w1, b1, out_dtype=jnp.bfloat16, tile_h=tile_h)
        if i < n - 1:
            # Second conv of the level with the 2x2 avg-pool fused in.
            feat, head = conv3x3_lrelu(head, w2, b2, fuse_pool=True,
                                       out_dtype=jnp.float32,
                                       pool_dtype=jnp.bfloat16, tile_h=tile_h)
        else:
            feat = conv3x3_lrelu(head, w2, b2, out_dtype=jnp.float32, tile_h=tile_h)
        pyramid.append(feat)
    return pyramid


def init_params(key, filters=8, sub_levels=3, in_ch=3):
    """Deterministic synthetic init mirroring the PyTorch conv shapes (HWIO)."""
    params = []
    cin = in_ch
    for i in range(sub_levels):
        cout = filters << i
        for (ci, co) in ((cin, cout), (cout, cout)):
            key, kw, kb = jax.random.split(key, 3)
            scale = 1.0 / jnp.sqrt(3.0 * 3.0 * ci)
            w = scale * jax.random.normal(kw, (3, 3, ci, co), dtype=jnp.float32)
            b = 0.01 * jax.random.normal(kb, (co,), dtype=jnp.float32)
            params.append((w, b))
        cin = cout
    return params


# ----------------------------------------------------------------------------
# Pure-JAX reference (for correctness checking only)
# ----------------------------------------------------------------------------
def _conv_ref(x, w, b, *, bf16_inputs):
    if bf16_inputs:   # emulate the kernel's bf16-input / f32-accumulate matmul
        x = x.astype(jnp.bfloat16)
        w = w.astype(jnp.bfloat16)
    y = jax.lax.conv_general_dilated(
        x, w, window_strides=(1, 1), padding="SAME",
        dimension_numbers=("NHWC", "HWIO", "NHWC"),
        preferred_element_type=jnp.float32)
    y = y + b[None, None, None, :]
    return jnp.where(y >= 0.0, y, 0.2 * y)


def _pool_ref(x):
    return 0.25 * (x[:, 0::2, 0::2] + x[:, 0::2, 1::2]
                   + x[:, 1::2, 0::2] + x[:, 1::2, 1::2])


def _ref_forward(image, params, n, *, bf16_boundaries):
    """bf16_boundaries=True matches the kernel numerics (bf16 matmul inputs and
    bf16 inter-level activations, f32 pyramid outputs)."""
    head = image
    pyr = []
    for i in range(n):
        y1 = _conv_ref(head, *params[2 * i], bf16_inputs=bf16_boundaries)
        head = y1.astype(jnp.bfloat16) if bf16_boundaries else y1
        y2 = _conv_ref(head, *params[2 * i + 1], bf16_inputs=bf16_boundaries)
        pyr.append(y2)
        if i < n - 1:
            pooled = _pool_ref(y2)
            head = pooled.astype(jnp.bfloat16) if bf16_boundaries else pooled
    return pyr


if __name__ == "__main__":
    FILTERS = 8       # small stand-in for the default 64
    SUB_LEVELS = 3
    N, H, W, C_IN = 2, 16, 16, 3
    TILE_H = 8        # forces 2 H-tiles at level 0 -> exercises the halo path

    key = jax.random.PRNGKey(0)
    key, kx = jax.random.split(key)
    image = jax.random.normal(kx, (N, H, W, C_IN), dtype=jnp.float32)
    params = init_params(key, filters=FILTERS, sub_levels=SUB_LEVELS, in_ch=C_IN)

    pyramid = sub_tree_extractor(image, params, SUB_LEVELS, tile_h=TILE_H)
    pyramid = [jax.block_until_ready(p) for p in pyramid]

    # sanity: shapes match the PyTorch module's pyramid (NHWC here), f32 feats
    expected = [(N, H >> i, W >> i, FILTERS << i) for i in range(SUB_LEVELS)]
    assert [tuple(p.shape) for p in pyramid] == expected, \
        ([tuple(p.shape) for p in pyramid], expected)
    assert all(p.dtype == jnp.float32 for p in pyramid)

    # tight check against a reference with matching bf16 numerics
    ref_bf16 = _ref_forward(image, params, SUB_LEVELS, bf16_boundaries=True)
    for p, r in zip(pyramid, ref_bf16):
        assert jnp.allclose(p, r, atol=3e-3, rtol=3e-3), \
            float(jnp.max(jnp.abs(p - r)))

    # looser sanity check against the full-f32 module semantics
    ref_f32 = _ref_forward(image, params, SUB_LEVELS, bf16_boundaries=False)
    for p, r in zip(pyramid, ref_f32):
        assert jnp.allclose(p, r, atol=1e-1, rtol=1e-1), \
            float(jnp.max(jnp.abs(p - r)))

    print("KERNEL_OK")
</pallas_src>

<mosaic_0001>
module attributes {stable_mosaic.version = 11 : i64} {
  func.func @kernel(%arg0: i32, %arg1: i32, %arg2: memref<1x8x16x3xf32, #tpu.memory_space<vmem>>, %arg3: memref<1x1x16x3xf32, #tpu.memory_space<vmem>>, %arg4: memref<1x1x16x3xf32, #tpu.memory_space<vmem>>, %arg5: memref<27x8xbf16, #tpu.memory_space<vmem>>, %arg6: memref<1x8xf32, #tpu.memory_space<vmem>>, %arg7: memref<1x8x16x8xbf16, #tpu.memory_space<vmem>>) attributes {dimension_semantics = [#tpu.dimension_semantics<parallel>, #tpu.dimension_semantics<parallel>], iteration_bounds = array<i64: 2, 2>, scalar_prefetch = 0 : i64, scratch_operands = 0 : i64, tpu.core_type = #tpu.core_type<tc>, window_params = [{transform_indices = @transform_0, window_bounds = array<i64: 1, 8, 16, 3>}, {transform_indices = @transform_1, window_bounds = array<i64: 1, 1, 16, 3>}, {transform_indices = @transform_2, window_bounds = array<i64: 1, 1, 16, 3>}, {pipeline_mode = #tpu.pipeline_mode<synchronous>, transform_indices = @transform_3, window_bounds = array<i64: 27, 8>}, {pipeline_mode = #tpu.pipeline_mode<synchronous>, transform_indices = @transform_4, window_bounds = array<i64: 1, 8>}, {transform_indices = @transform_5, window_bounds = array<i64: 1, 8, 16, 8>}]} {
    %c0 = arith.constant 0 : index
    %c0_0 = arith.constant 0 : index
    %c0_1 = arith.constant 0 : index
    %c0_2 = arith.constant 0 : index
    %0 = vector.load %arg3[%c0, %c0_0, %c0_1, %c0_2] : memref<1x1x16x3xf32, #tpu.memory_space<vmem>>, vector<1x1x16x3xf32>
    %1 = vector.shape_cast %0 : vector<1x1x16x3xf32> to vector<16x3xf32>
    %c0_3 = arith.constant 0 : index
    %c0_4 = arith.constant 0 : index
    %c0_5 = arith.constant 0 : index
    %c0_6 = arith.constant 0 : index
    %2 = vector.load %arg4[%c0_3, %c0_4, %c0_5, %c0_6] : memref<1x1x16x3xf32, #tpu.memory_space<vmem>>, vector<1x1x16x3xf32>
    %3 = vector.shape_cast %2 : vector<1x1x16x3xf32> to vector<16x3xf32>
    %c0_i32 = arith.constant 0 : i32
    %4 = arith.cmpi sgt, %arg1, %c0_i32 : i32
    %cst = arith.constant 1.000000e+00 : f32
    %cst_7 = arith.constant 0.000000e+00 : f32
    %5 = arith.select %4, %cst, %cst_7 : f32
    %6 = vector.broadcast %5 : f32 to vector<16x3xf32>
    %7 = arith.mulf %1, %6 : vector<16x3xf32>
    %c1_i32 = arith.constant 1 : i32
    %8 = arith.cmpi slt, %arg1, %c1_i32 : i32
    %cst_8 = arith.constant 1.000000e+00 : f32
    %cst_9 = arith.constant 0.000000e+00 : f32
    %9 = arith.select %8, %cst_8, %cst_9 : f32
    %10 = vector.broadcast %9 : f32 to vector<16x3xf32>
    %11 = arith.mulf %3, %10 : vector<16x3xf32>
    %cst_10 = arith.constant 0.000000e+00 : bf16
    %12 = vector.broadcast %cst_10 : bf16 to vector<1x3xbf16>
    %13 = arith.truncf %7 : vector<16x3xf32> to vector<16x3xbf16>
    %c0_11 = arith.constant 0 : index
    %c0_12 = arith.constant 0 : index
    %c0_13 = arith.constant 0 : index
    %c0_14 = arith.constant 0 : index
    %14 = vector.load %arg2[%c0_11, %c0_12, %c0_13, %c0_14] : memref<1x8x16x3xf32, #tpu.memory_space<vmem>>, vector<1x8x16x3xf32>
    %15 = vector.shape_cast %14 : vector<1x8x16x3xf32> to vector<8x16x3xf32>
    %16 = arith.truncf %15 : vector<8x16x3xf32> to vector<8x16x3xbf16>
    %17 = vector.shape_cast %16 : vector<8x16x3xbf16> to vector<128x3xbf16>
    %18 = arith.truncf %11 : vector<16x3xf32> to vector<16x3xbf16>
    %19 = tpu.concatenate %12, %13, %17, %18, %12 in 0 : vector<1x3xbf16>, vector<16x3xbf16>, vector<128x3xbf16>, vector<16x3xbf16>, vector<1x3xbf16> -> vector<162x3xbf16>
    %20 = tpu.iota {dimensions = array<i32: 0>} : vector<128x1xi32>
    %c16_i32 = arith.constant 16 : i32
    %c0_i32_15 = arith.constant 0 : i32
    %21 = arith.cmpi eq, %c16_i32, %c0_i32_15 : i32
    %c1_i32_16 = arith.constant 1 : i32
    %22 = arith.select %21, %c1_i32_16, %c16_i32 : i32
    %23 = vector.broadcast %22 : i32 to vector<128x1xi32>
    %24 = arith.remsi %20, %23 : vector<128x1xi32>
    %c0_i32_17 = arith.constant 0 : i32
    %25 = vector.broadcast %c0_i32_17 : i32 to vector<128x1xi32>
    %26 = arith.cmpi ne, %24, %25 : vector<128x1xi32>
    %c0_i32_18 = arith.constant 0 : i32
    %27 = vector.broadcast %c0_i32_18 : i32 to vector<128x1xi32>
    %28 = arith.cmpi slt, %24, %27 : vector<128x1xi32>
    %c0_i32_19 = arith.constant 0 : i32
    %29 = arith.cmpi slt, %22, %c0_i32_19 : i32
    %30 = vector.broadcast %29 : i1 to vector<128x1xi1>
    %31 = vector.broadcast %30 : vector<128x1xi1> to vector<128x1xi1>
    %32 = arith.xori %28, %31 : vector<128x1xi1>
    %33 = arith.andi %32, %26 : vector<128x1xi1>
    %34 = vector.broadcast %22 : i32 to vector<128x1xi32>
    %35 = arith.addi %24, %34 : vector<128x1xi32>
    %36 = arith.select %33, %35, %24 : vector<128x1xi1>, vector<128x1xi32>
    %c0_i32_20 = arith.constant 0 : i32
    %37 = vector.broadcast %c0_i32_20 : i32 to vector<128x1xi32>
    %38 = arith.cmpi sgt, %36, %37 : vector<128x1xi32>
    %c15_i32 = arith.constant 15 : i32
    %39 = vector.broadcast %c15_i32 : i32 to vector<128x1xi32>
    %40 = arith.cmpi slt, %36, %39 : vector<128x1xi32>
    %41 = vector.extract_strided_slice %19 {offsets = [0, 0], sizes = [128, 3], strides = [1, 1]} : vector<162x3xbf16> to vector<128x3xbf16>
    %cst_21 = arith.constant 0.000000e+00 : bf16
    %42 = vector.shape_cast %38 : vector<128x1xi1> to vector<128x1xi1>
    %43 = vector.broadcast %42 : vector<128x1xi1> to vector<128x3xi1>
    %44 = vector.broadcast %cst_21 : bf16 to vector<128x3xbf16>
    %45 = arith.select %43, %41, %44 : vector<128x3xi1>, vector<128x3xbf16>
    %46 = vector.extract_strided_slice %19 {offsets = [1, 0], sizes = [128, 3], strides = [1, 1]} : vector<162x3xbf16> to vector<128x3xbf16>
    %47 = vector.extract_strided_slice %19 {offsets = [2, 0], sizes = [128, 3], strides = [1, 1]} : vector<162x3xbf16> to vector<128x3xbf16>
    %cst_22 = arith.constant 0.000000e+00 : bf16
    %48 = vector.shape_cast %40 : vector<128x1xi1> to vector<128x1xi1>
    %49 = vector.broadcast %48 : vector<128x1xi1> to vector<128x3xi1>
    %50 = vector.broadcast %cst_22 : bf16 to vector<128x3xbf16>
    %51 = arith.select %49, %47, %50 : vector<128x3xi1>, vector<128x3xbf16>
    %52 = vector.extract_strided_slice %19 {offsets = [16, 0], sizes = [128, 3], strides = [1, 1]} : vector<162x3xbf16> to vector<128x3xbf16>
    %cst_23 = arith.constant 0.000000e+00 : bf16
    %53 = vector.shape_cast %38 : vector<128x1xi1> to vector<128x1xi1>
    %54 = vector.broadcast %53 : vector<128x1xi1> to vector<128x3xi1>
    %55 = vector.broadcast %cst_23 : bf16 to vector<128x3xbf16>
    %56 = arith.select %54, %52, %55 : vector<128x3xi1>, vector<128x3xbf16>
    %57 = vector.extract_strided_slice %19 {offsets = [17, 0], sizes = [128, 3], strides = [1, 1]} : vector<162x3xbf16> to vector<128x3xbf16>
    %58 = vector.extract_strided_slice %19 {offsets = [18, 0], sizes = [128, 3], strides = [1, 1]} : vector<162x3xbf16> to vector<128x3xbf16>
    %cst_24 = arith.constant 0.000000e+00 : bf16
    %59 = vector.shape_cast %40 : vector<128x1xi1> to vector<128x1xi1>
    %60 = vector.broadcast %59 : vector<128x1xi1> to vector<128x3xi1>
    %61 = vector.broadcast %cst_24 : bf16 to vector<128x3xbf16>
    %62 = arith.select %60, %58, %61 : vector<128x3xi1>, vector<128x3xbf16>
    %63 = vector.extract_strided_slice %19 {offsets = [32, 0], sizes = [128, 3], strides = [1, 1]} : vector<162x3xbf16> to vector<128x3xbf16>
    %cst_25 = arith.constant 0.000000e+00 : bf16
    %64 = vector.shape_cast %38 : vector<128x1xi1> to vector<128x1xi1>
    %65 = vector.broadcast %64 : vector<128x1xi1> to vector<128x3xi1>
    %66 = vector.broadcast %cst_25 : bf16 to vector<128x3xbf16>
    %67 = arith.select %65, %63, %66 : vector<128x3xi1>, vector<128x3xbf16>
    %68 = vector.extract_strided_slice %19 {offsets = [33, 0], sizes = [128, 3], strides = [1, 1]} : vector<162x3xbf16> to vector<128x3xbf16>
    %69 = vector.extract_strided_slice %19 {offsets = [34, 0], sizes = [128, 3], strides = [1, 1]} : vector<162x3xbf16> to vector<128x3xbf16>
    %cst_26 = arith.constant 0.000000e+00 : bf16
    %70 = vector.shape_cast %40 : vector<128x1xi1> to vector<128x1xi1>
    %71 = vector.broadcast %70 : vector<128x1xi1> to vector<128x3xi1>
    %72 = vector.broadcast %cst_26 : bf16 to vector<128x3xbf16>
    %73 = arith.select %71, %69, %72 : vector<128x3xi1>, vector<128x3xbf16>
    %74 = tpu.concatenate %45, %46, %51, %56, %57, %62, %67, %68, %73 in 1 : vector<128x3xbf16>, vector<128x3xbf16>, vector<128x3xbf16>, vector<128x3xbf16>, vector<128x3xbf16>, vector<128x3xbf16>, vector<128x3xbf16>, vector<128x3xbf16>, vector<128x3xbf16> -> vector<128x27xbf16>
    %c0_27 = arith.constant 0 : index
    %c0_28 = arith.constant 0 : index
    %75 = vector.load %arg5[%c0_27, %c0_28] : memref<27x8xbf16, #tpu.memory_space<vmem>>, vector<27x8xbf16>
    %cst_29 = arith.constant dense<0.000000e+00> : vector<128x8xf32>
    %76 = tpu.matmul %74, %75, %cst_29 {dimension_numbers = #tpu.dot_dimension_numbers<[1], [0], [0], [1], [0, 0, 1, 1], [], []>} : vector<128x27xbf16>, vector<27x8xbf16>, vector<128x8xf32> -> vector<128x8xf32>
    %c0_30 = arith.constant 0 : index
    %c0_31 = arith.constant 0 : index
    %77 = vector.load %arg6[%c0_30, %c0_31] : memref<1x8xf32, #tpu.memory_space<vmem>>, vector<1x8xf32>
    %78 = vector.broadcast %77 : vector<1x8xf32> to vector<128x8xf32>
    %79 = arith.addf %76, %78 : vector<128x8xf32>
    %cst_32 = arith.constant 0.000000e+00 : f32
    %80 = vector.broadcast %cst_32 : f32 to vector<128x8xf32>
    %81 = arith.cmpf oge, %79, %80 : vector<128x8xf32>
    %cst_33 = arith.constant 2.000000e-01 : f32
    %82 = vector.broadcast %cst_33 : f32 to vector<128x8xf32>
    %83 = arith.mulf %82, %79 : vector<128x8xf32>
    %84 = arith.select %81, %79, %83 : vector<128x8xi1>, vector<128x8xf32>
    %85 = vector.shape_cast %84 : vector<128x8xf32> to vector<1x8x16x8xf32>
    %86 = arith.truncf %85 : vector<1x8x16x8xf32> to vector<1x8x16x8xbf16>
    %c0_34 = arith.constant 0 : index
    %c0_35 = arith.constant 0 : index
    %c0_36 = arith.constant 0 : index
    %c0_37 = arith.constant 0 : index
    %87 = vector.load %arg7[%c0_34, %c0_35, %c0_36, %c0_37] : memref<1x8x16x8xbf16, #tpu.memory_space<vmem>>, vector<1x8x16x8xbf16>
    tpu.vector_store %arg7[%c0_34, %c0_35, %c0_36, %c0_37], %86 {strides = array<i32>} : memref<1x8x16x8xbf16, #tpu.memory_space<vmem>>, vector<1x8x16x8xbf16>,
    return
  }
  func.func @transform_0(%arg0: i32, %arg1: i32) -> (i32, i32, i32, i32) {
    %c0_i32 = arith.constant 0 : i32
    %c0_i32_0 = arith.constant 0 : i32
    %c0_i32_1 = arith.constant 0 : i32
    return %arg0, %arg1, %c0_i32, %c0_i32_0 : i32, i32, i32, i32
  }
  func.func @transform_1(%arg0: i32, %arg1: i32) -> (i32, i32, i32, i32) {
    %c8_i32 = arith.constant 8 : i32
    %0 = arith.muli %arg1, %c8_i32 : i32
    %c1_i32 = arith.constant 1 : i32
    %1 = arith.subi %0, %c1_i32 : i32
    %c0_i32 = arith.constant 0 : i32
    %2 = arith.maxsi %1, %c0_i32 : i32
    %c0_i32_0 = arith.constant 0 : i32
    %c0_i32_1 = arith.constant 0 : i32
    %c0_i32_2 = arith.constant 0 : i32
    return %arg0, %2, %c0_i32_0, %c0_i32_1 : i32, i32, i32, i32
  }
  func.func @transform_2(%arg0: i32, %arg1: i32) -> (i32, i32, i32, i32) {
    %c8_i32 = arith.constant 8 : i32
    %0 = arith.muli %arg1, %c8_i32 : i32
    %c8_i32_0 = arith.constant 8 : i32
    %1 = arith.addi %0, %c8_i32_0 : i32
    %c15_i32 = arith.constant 15 : i32
    %2 = arith.minsi %1, %c15_i32 : i32
    %c0_i32 = arith.constant 0 : i32
    %c0_i32_1 = arith.constant 0 : i32
    %c0_i32_2 = arith.constant 0 : i32
    return %arg0, %2, %c0_i32, %c0_i32_1 : i32, i32, i32, i32
  }
  func.func @transform_3(%arg0: i32, %arg1: i32) -> (i32, i32) {
    %c0_i32 = arith.constant 0 : i32
    %c0_i32_0 = arith.constant 0 : i32
    %c0_i32_1 = arith.constant 0 : i32
    return %c0_i32, %c0_i32_0 : i32, i32
  }
  func.func @transform_4(%arg0: i32, %arg1: i32) -> (i32, i32) {
    %c0_i32 = arith.constant 0 : i32
    %c0_i32_0 = arith.constant 0 : i32
    %c0_i32_1 = arith.constant 0 : i32
    return %c0_i32, %c0_i32_0 : i32, i32
  }
  func.func @transform_5(%arg0: i32, %arg1: i32) -> (i32, i32, i32, i32) {
    %c0_i32 = arith.constant 0 : i32
    %c0_i32_0 = arith.constant 0 : i32
    %c0_i32_1 = arith.constant 0 : i32
    return %arg0, %arg1, %c0_i32, %c0_i32_0 : i32, i32, i32, i32
  }
}

</mosaic_0001>

<llo_original>
// kernel: tpu_custom_call.1
$region0: #{tpu_custom_call.1}
  #allocation0 [shape = 'u32[]', space=smem, size = 0x4, offset = 0x4, fixed_abs, tag = 'smem constant byte address 0x4 - core index']
  #allocation1 [shape = 'u32[144,128]{1,0:T(1,128)}', space=vmem, size = 0x12000, scoped, tag = 'internal scratch']
  %s0 = inlined_call_operand.vmem [shape: f32[2,16,16,3], index: 0, kind: input, shape index: {}]
  %s1 = inlined_call_operand.vmem [shape: f32[2,16,16,3], index: 1, kind: input, shape index: {}]
  %s2 = inlined_call_operand.vmem [shape: f32[2,16,16,3], index: 2, kind: input, shape index: {}]
  %s3 = inlined_call_operand.vmem [shape: bf16[27,8], index: 3, kind: input, shape index: {}]
  %s4 = inlined_call_operand.vmem [shape: f32[1,8], index: 4, kind: input, shape index: {}]
  %s5 = inlined_call_operand.vmem [shape: bf16[2,16,16,8], index: 5, kind: output, shape index: {}]
  %s6 = sld [smem:[#allocation0]]
  $region53: #{tpu_custom_call.1} parent=0
    _
  %s8 = ssub.s32 1, %s6
  %s9 = scalar_select 0, %s8, %s6
  loop: start=0, step=1, limit=6
  $region2: #{tpu_custom_call.1} parent=0 // loop_pre_header
    _
  $region3: #{tpu_custom_call.1} parent=0 // loop_header
    %s11 = sphi 0, %s15
    %p12 = scmp.ge.s32.totalorder %s11, 6
    %s18 = sphi 0, %s30
    %s19 = sphi 0, %s26
    %s20 = sphi 0, %s18
    %s21 = sphi 0, %s19
    %s22 = sphi 0, %s20
    %s23 = sphi 0, %s21
    %s35 = sphi 0, %s37
    %s38 = sphi 0, %s35
    %s39 = sphi 0, %s38
    %s55 = sphi 0, %s39
    %s71 = sphi 0, %s73
    %s74 = sphi 0, %s71
    %s75 = sphi 0, %s74
    %s91 = sphi 0, %s75
    %s107 = sphi 0, %s109
    %s110 = sphi 0, %s107
    %s111 = sphi 0, %s110
    %s127 = sphi 0, %s111
    %s131 = sphi 0, %s131
    %s133 = sphi 0, %s131
    %s134 = sphi 0, %s133
    %s148 = sphi 0, %s134
    %s152 = sphi 0, %s152
    %s154 = sphi 0, %s152
    %s155 = sphi 0, %s154
    %s169 = sphi 0, %s155
    %s177 = sphi 0, %s179
    %s180 = sphi 0, %s177
    %s181 = sphi 0, %s180
    %s197 = sphi 0, %s181
  $region4: #{tpu_custom_call.1} parent=0 // loop_header_branch
    %14 = sbr.rel (%p12) target = $region8
  $region5: #{tpu_custom_call.1} parent=0 // loop_body
    %s16 = ssub.s32 %s11, 1
    %s17 = ssub.s32 %s11, 2
    %s24 = sadd.s32 1, %s19
    %p25 = scmp.ge.s32.totalorder %s24, 2
    %s26 = scalar_select %p25, 0, %s24
    %s27 = sadd.s32 1, %s18
    %s28 = scalar_select %p25, %s27, %s18
    %p29 = scmp.ge.s32.totalorder %s28, 2
    %s30 = scalar_select %p29, 0, %s28
    %s31 = ssub.s32 %s18, %s30
    %s32 = ssub.s32 %s19, %s26
    %s33 = sor.u32 %s31, %s32
    %p34 = scmp.eq.s32.totalorder %s33, 0
    %s36 = sadd.s32 %s35, 1
    %s37 = scalar_select %p34, %s35, %s36
    %p40 = pneg %p34
    %p41 = scmp.eq.s32.totalorder %s11, 3
    %p42 = por %p40, %p41
    %p43 = scmp.ne.s32.totalorder %s35, %s38
    %p44 = scmp.eq.s32.totalorder %s11, 0
    %p45 = por %p43, %p44
    %p46 = scmp.ne.s32.totalorder %s35, %s38
    %p47 = scmp.eq.s32.totalorder %s16, 3
    %p48 = por %p46, %p47
    %p49 = scmp.ne.s32.totalorder %s38, %s39
    %p50 = scmp.eq.s32.totalorder %s16, 0
    %p51 = por %p49, %p50
    %p52 = scmp.ne.s32.totalorder %s38, %s39
    %p53 = scmp.eq.s32.totalorder %s17, 3
    %p54 = por %p52, %p53
    %p56 = scmp.ne.s32.totalorder %s39, %s55
    %p57 = scmp.eq.s32.totalorder %s17, 0
    %p58 = por %p56, %p57
    %s59 = smul.u32 %s19, 8
    %s60 = ssub.s32 %s59, 1
    %p61 = scmp.gt.s32.totalorder %s60, 0
    %s62 = scalar_select %p61, %s60, 0
    %s63 = smul.u32 %s26, 8
    %s64 = ssub.s32 %s63, 1
    %p65 = scmp.gt.s32.totalorder %s64, 0
    %s66 = scalar_select %p65, %s64, 0
    %s67 = ssub.s32 %s18, %s30
    %s68 = ssub.s32 %s62, %s66
    %s69 = sor.u32 %s67, %s68
    %p70 = scmp.eq.s32.totalorder %s69, 0
    %s72 = sadd.s32 %s71, 1
    %s73 = scalar_select %p70, %s71, %s72
    %p76 = pneg %p70
    %p77 = scmp.eq.s32.totalorder %s11, 3
    %p78 = por %p76, %p77
    %p79 = scmp.ne.s32.totalorder %s71, %s74
    %p80 = scmp.eq.s32.totalorder %s11, 0
    %p81 = por %p79, %p80
    %p82 = scmp.ne.s32.totalorder %s71, %s74
    %p83 = scmp.eq.s32.totalorder %s16, 3
    %p84 = por %p82, %p83
    %p85 = scmp.ne.s32.totalorder %s74, %s75
    %p86 = scmp.eq.s32.totalorder %s16, 0
    %p87 = por %p85, %p86
    %p88 = scmp.ne.s32.totalorder %s74, %s75
    %p89 = scmp.eq.s32.totalorder %s17, 3
    %p90 = por %p88, %p89
    %p92 = scmp.ne.s32.totalorder %s75, %s91
    %p93 = scmp.eq.s32.totalorder %s17, 0
    %p94 = por %p92, %p93
    %s95 = smul.u32 %s19, 8
    %s96 = sadd.s32 %s95, 8
    %p97 = scmp.lt.s32.totalorder %s96, 15
    %s98 = scalar_select %p97, %s96, 15
    %s99 = smul.u32 %s26, 8
    %s100 = sadd.s32 %s99, 8
    %p101 = scmp.lt.s32.totalorder %s100, 15
    %s102 = scalar_select %p101, %s100, 15
    %s103 = ssub.s32 %s18, %s30
    %s104 = ssub.s32 %s98, %s102
    %s105 = sor.u32 %s103, %s104
    %p106 = scmp.eq.s32.totalorder %s105, 0
    %s108 = sadd.s32 %s107, 1
    %s109 = scalar_select %p106, %s107, %s108
    %p112 = pneg %p106
    %p113 = scmp.eq.s32.totalorder %s11, 3
    %p114 = por %p112, %p113
    %p115 = scmp.ne.s32.totalorder %s107, %s110
    %p116 = scmp.eq.s32.totalorder %s11, 0
    %p117 = por %p115, %p116
    %p118 = scmp.ne.s32.totalorder %s107, %s110
    %p119 = scmp.eq.s32.totalorder %s16, 3
    %p120 = por %p118, %p119
    %p121 = scmp.ne.s32.totalorder %s110, %s111
    %p122 = scmp.eq.s32.totalorder %s16, 0
    %p123 = por %p121, %p122
    %p124 = scmp.ne.s32.totalorder %s110, %s111
    %p125 = scmp.eq.s32.totalorder %s17, 3
    %p126 = por %p124, %p125
    %p128 = scmp.ne.s32.totalorder %s111, %s127
    %p129 = scmp.eq.s32.totalorder %s17, 0
    %p130 = por %p128, %p129
    %s132 = sadd.s32 %s131, 1
    %p135 = scmp.eq.s32.totalorder %s11, 3
    %p136 = scmp.ne.s32.totalorder %s131, %s133
    %p137 = scmp.eq.s32.totalorder %s11, 0
    %p138 = por %p136, %p137
    %p139 = scmp.ne.s32.totalorder %s131, %s133
    %p140 = scmp.eq.s32.totalorder %s16, 3
    %p141 = por %p139, %p140
    %p142 = scmp.ne.s32.totalorder %s133, %s134
    %p143 = scmp.eq.s32.totalorder %s16, 0
    %p144 = por %p142, %p143
    %p145 = scmp.ne.s32.totalorder %s133, %s134
    %p146 = scmp.eq.s32.totalorder %s17, 3
    %p147 = por %p145, %p146
    %p149 = scmp.ne.s32.totalorder %s134, %s148
    %p150 = scmp.eq.s32.totalorder %s17, 0
    %p151 = por %p149, %p150
    %s153 = sadd.s32 %s152, 1
    %p156 = scmp.eq.s32.totalorder %s11, 3
    %p157 = scmp.ne.s32.totalorder %s152, %s154
    %p158 = scmp.eq.s32.totalorder %s11, 0
    %p159 = por %p157, %p158
    %p160 = scmp.ne.s32.totalorder %s152, %s154
    %p161 = scmp.eq.s32.totalorder %s16, 3
    %p162 = por %p160, %p161
    %p163 = scmp.ne.s32.totalorder %s154, %s155
    %p164 = scmp.eq.s32.totalorder %s16, 0
    %p165 = por %p163, %p164
    %p166 = scmp.ne.s32.totalorder %s154, %s155
    %p167 = scmp.eq.s32.totalorder %s17, 3
    %p168 = por %p166, %p167
    %p170 = scmp.ne.s32.totalorder %s155, %s169
    %p171 = scmp.eq.s32.totalorder %s17, 0
    %p172 = por %p170, %p171
    %s173 = ssub.s32 %s18, %s30
    %s174 = ssub.s32 %s19, %s26
    %s175 = sor.u32 %s173, %s174
    %p176 = scmp.eq.s32.totalorder %s175, 0
    %s178 = sadd.s32 %s177, 1
    %s179 = scalar_select %p176, %s177, %s178
    %p182 = pneg %p176
    %p183 = scmp.eq.s32.totalorder %s11, 3
    %p184 = por %p182, %p183
    %p185 = scmp.ne.s32.totalorder %s177, %s180
    %p186 = scmp.eq.s32.totalorder %s11, 0
    %p187 = por %p185, %p186
    %p188 = scmp.ne.s32.totalorder %s177, %s180
    %p189 = scmp.eq.s32.totalorder %s16, 3
    %p190 = por %p188, %p189
    %p191 = scmp.ne.s32.totalorder %s180, %s181
    %p192 = scmp.eq.s32.totalorder %s16, 0
    %p193 = por %p191, %p192
    %p194 = scmp.ne.s32.totalorder %s180, %s181
    %p195 = scmp.eq.s32.totalorder %s17, 3
    %p196 = por %p194, %p195
    %p198 = scmp.ne.s32.totalorder %s181, %s197
    %p199 = scmp.eq.s32.totalorder %s17, 0
    %p200 = por %p198, %p199
    %p201 = scmp.le.s32.totalorder 1, %s11
    %p202 = scmp.lt.s32.totalorder %s11, 5
    %p203 = pnand %p201, %p202
    %p204 = pneg %p203
    // Predicated region
    $region9: #{tpu_custom_call.1} parent=5 // pred_check
      _
    $region10: #{tpu_custom_call.1} parent=5 // pred_check_branch
      %206 = sbr.rel (%p203) target = $region12
    $region11: #{tpu_custom_call.1} parent=5 // pred_region
      %s207 = ssub.s32 %s11, 1
      // Predicated region
      $region13: #{tpu_custom_call.1} parent=11 // pred_check
        %p208 = pneg %p144
      $region14: #{tpu_custom_call.1} parent=11 // pred_check_branch
        %210 = sbr.rel (%p208) target = $region16
      $region15: #{tpu_custom_call.1} parent=11 // pred_region
        _
      $region16: #{tpu_custom_call.1} parent=11 // pred_fallthru
        _
      // Predicated region
      $region17: #{tpu_custom_call.1} parent=11 // pred_check
        %p211 = pneg %p165
      $region18: #{tpu_custom_call.1} parent=11 // pred_check_branch
        %213 = sbr.rel (%p211) target = $region20
      $region19: #{tpu_custom_call.1} parent=11 // pred_region
        _
      $region20: #{tpu_custom_call.1} parent=11 // pred_fallthru
        _
    $region12: #{tpu_custom_call.1} parent=5 // pred_fallthru
      _
    %p214 = scmp.lt.s32.totalorder %s11, 4
    // Predicated region
    $region21: #{tpu_custom_call.1} parent=5 // pred_check
      %p215 = pneg %p214
    $region22: #{tpu_custom_call.1} parent=5 // pred_check_branch
      %217 = sbr.rel (%p215) target = $region24
    $region23: #{tpu_custom_call.1} parent=5 // pred_region
      // Predicated region
      $region25: #{tpu_custom_call.1} parent=23 // pred_check
        %p218 = pneg %p45
      $region26: #{tpu_custom_call.1} parent=23 // pred_check_branch
        %220 = sbr.rel (%p218) target = $region28
      $region27: #{tpu_custom_call.1} parent=23 // pred_region
        %s221 = smul.u32 8, %s19
        %p222 = scmp.lt.s32.totalorder %s18, 1
        %s223 = scalar_select %p222, %s18, 1
        %p224 = scmp.lt.s32.totalorder %s221, 15
        %s225 = scalar_select %p224, %s221, 15
        %s226 = smul.addr %s225, 2
        %s227 = smul.addr %s223, 32
        %s228 = sadd.s32 %s226, %s227
        %s229 = smul.addr %s228, 8
        %s230 = scalar_lea.vmem %s0, %s229
        %s231 = smul.u32 8, %s19
      $region28: #{tpu_custom_call.1} parent=23 // pred_fallthru
        _
      // Predicated region
      $region29: #{tpu_custom_call.1} parent=23 // pred_check
        %p232 = pneg %p81
      $region30: #{tpu_custom_call.1} parent=23 // pred_check_branch
        %234 = sbr.rel (%p232) target = $region32
      $region31: #{tpu_custom_call.1} parent=23 // pred_region
        %s235 = smul.u32 %s19, 8
        %s236 = ssub.s32 %s235, 1
        %p237 = scmp.gt.s32.totalorder %s236, 0
        %s238 = scalar_select %p237, %s236, 0
        %p239 = scmp.lt.s32.totalorder %s18, 1
        %s240 = scalar_select %p239, %s18, 1
        %p241 = scmp.lt.s32.totalorder %s238, 15
        %s242 = scalar_select %p241, %s238, 15
        %s243 = smul.addr %s242, 2
        %s244 = smul.addr %s240, 32
        %s245 = sadd.s32 %s243, %s244
        %s246 = smul.addr %s245, 8
        %s247 = scalar_lea.vmem %s1, %s246
        %s248 = smul.u32 %s19, 8
        %s249 = ssub.s32 %s248, 1
        %p250 = scmp.gt.s32.totalorder %s249, 0
        %s251 = scalar_select %p250, %s249, 0
      $region32: #{tpu_custom_call.1} parent=23 // pred_fallthru
        _
      // Predicated region
      $region33: #{tpu_custom_call.1} parent=23 // pred_check
        %p252 = pneg %p117
      $region34: #{tpu_custom_call.1} parent=23 // pred_check_branch
        %254 = sbr.rel (%p252) target = $region36
      $region35: #{tpu_custom_call.1} parent=23 // pred_region
        %s255 = smul.u32 %s19, 8
        %s256 = sadd.s32 %s255, 8
        %p257 = scmp.lt.s32.totalorder %s256, 15
        %s258 = scalar_select %p257, %s256, 15
        %p259 = scmp.lt.s32.totalorder %s18, 1
        %s260 = scalar_select %p259, %s18, 1
        %p261 = scmp.lt.s32.totalorder %s258, 15
        %s262 = scalar_select %p261, %s258, 15
        %s263 = smul.addr %s262, 2
        %s264 = smul.addr %s260, 32
        %s265 = sadd.s32 %s263, %s264
        %s266 = smul.addr %s265, 8
        %s267 = scalar_lea.vmem %s2, %s266
        %s268 = smul.u32 %s19, 8
        %s269 = sadd.s32 %s268, 8
        %p270 = scmp.lt.s32.totalorder %s269, 15
        %s271 = scalar_select %p270, %s269, 15
      $region36: #{tpu_custom_call.1} parent=23 // pred_fallthru
        _
    $region24: #{tpu_custom_call.1} parent=5 // pred_fallthru
      _
    %p272 = scmp.le.s32.totalorder 1, %s11
    %p273 = scmp.lt.s32.totalorder %s11, 5
    %p274 = pnand %p272, %p273
    %p275 = pneg %p274
    // Predicated region
    $region37: #{tpu_custom_call.1} parent=5 // pred_check
      _
    $region38: #{tpu_custom_call.1} parent=5 // pred_check_branch
      %277 = sbr.rel (%p274) target = $region40
    $region39: #{tpu_custom_call.1} parent=5 // pred_region
      %s278 = ssub.s32 %s11, 1
      %s279 = smul.u32 8, %s21
      %p280 = scmp.lt.s32.totalorder %s20, 1
      %s281 = scalar_select %p280, %s20, 1
      %p282 = scmp.lt.s32.totalorder %s279, 15
      %s283 = scalar_select %p282, %s279, 15
      %s284 = smul.addr %s283, 2
      %s285 = smul.addr %s281, 32
      %s286 = sadd.s32 %s284, %s285
      %s287 = smul.addr %s286, 8
      %s288 = scalar_lea.vmem %s0, %s287
      %p289 = pneg %p51
      %p290 = pneg %p48
      %s291 = smul.u32 %s21, 8
      %s292 = ssub.s32 %s291, 1
      %p293 = scmp.gt.s32.totalorder %s292, 0
      %s294 = scalar_select %p293, %s292, 0
      %p295 = scmp.lt.s32.totalorder %s20, 1
      %s296 = scalar_select %p295, %s20, 1
      %p297 = scmp.lt.s32.totalorder %s294, 15
      %s298 = scalar_select %p297, %s294, 15
      %s299 = smul.addr %s298, 2
      %s300 = smul.addr %s296, 32
      %s301 = sadd.s32 %s299, %s300
      %s302 = smul.addr %s301, 8
      %s303 = scalar_lea.vmem %s1, %s302
      %p304 = pneg %p87
      %p305 = pneg %p84
      %s306 = smul.u32 %s21, 8
      %s307 = sadd.s32 %s306, 8
      %p308 = scmp.lt.s32.totalorder %s307, 15
      %s309 = scalar_select %p308, %s307, 15
      %p310 = scmp.lt.s32.totalorder %s20, 1
      %s311 = scalar_select %p310, %s20, 1
      %p312 = scmp.lt.s32.totalorder %s309, 15
      %s313 = scalar_select %p312, %s309, 15
      %s314 = smul.addr %s313, 2
      %s315 = smul.addr %s311, 32
      %s316 = sadd.s32 %s314, %s315
      %s317 = smul.addr %s316, 8
      %s318 = scalar_lea.vmem %s2, %s317
      %p319 = pneg %p123
      %p320 = pneg %p120
      %p321 = pneg %p144
      %p322 = pneg %p141
      %p323 = pneg %p165
      %p324 = pneg %p162
      %p325 = pneg %p193
      %p326 = pneg %p190
      %s327 = smul.u32 8, %s21
      %p328 = scmp.lt.s32.totalorder %s20, 1
      %s329 = scalar_select %p328, %s20, 1
      %p330 = scmp.lt.s32.totalorder %s327, 15
      %s331 = scalar_select %p330, %s327, 15
      %s332 = smul.addr %s331, 2
      %s333 = smul.addr %s329, 32
      %s334 = sadd.s32 %s332, %s333
      %s335 = smul.addr %s334, 4
      %s336 = scalar_lea.vmem %s5, %s335
      %s337 = smul.u32 8, %s21
      %p338 = scmp.lt.s32.totalorder %s20, 1
      %s339 = scalar_select %p338, %s20, 1
      %p340 = scmp.lt.s32.totalorder %s337, 15
      %s341 = scalar_select %p340, %s337, 15
      %s342 = smul.addr %s341, 2
      %s343 = smul.addr %s339, 32
      %s344 = sadd.s32 %s342, %s343
      %s345 = smul.addr %s344, 8
      %s346 = scalar_lea.vmem %s0, %s345
      %s347 = smul.u32 8, %s21
      %s348 = smul.u32 %s21, 8
      %s349 = ssub.s32 %s348, 1
      %p350 = scmp.gt.s32.totalorder %s349, 0
      %s351 = scalar_select %p350, %s349, 0
      %p352 = scmp.lt.s32.totalorder %s20, 1
      %s353 = scalar_select %p352, %s20, 1
      %p354 = scmp.lt.s32.totalorder %s351, 15
      %s355 = scalar_select %p354, %s351, 15
      %s356 = smul.addr %s355, 2
      %s357 = smul.addr %s353, 32
      %s358 = sadd.s32 %s356, %s357
      %s359 = smul.addr %s358, 8
      %s360 = scalar_lea.vmem %s1, %s359
      %s361 = smul.u32 %s21, 8
      %s362 = ssub.s32 %s361, 1
      %p363 = scmp.gt.s32.totalorder %s362, 0
      %s364 = scalar_select %p363, %s362, 0
      %s365 = smul.u32 %s21, 8
      %s366 = sadd.s32 %s365, 8
      %p367 = scmp.lt.s32.totalorder %s366, 15
      %s368 = scalar_select %p367, %s366, 15
      %p369 = scmp.lt.s32.totalorder %s20, 1
      %s370 = scalar_select %p369, %s20, 1
      %p371 = scmp.lt.s32.totalorder %s368, 15
      %s372 = scalar_select %p371, %s368, 15
      %s373 = smul.addr %s372, 2
      %s374 = smul.addr %s370, 32
      %s375 = sadd.s32 %s373, %s374
      %s376 = smul.addr %s375, 8
      %s377 = scalar_lea.vmem %s2, %s376
      %s378 = smul.u32 %s21, 8
      %s379 = sadd.s32 %s378, 8
      %p380 = scmp.lt.s32.totalorder %s379, 15
      %s381 = scalar_select %p380, %s379, 15
      %s382 = smul.u32 8, %s21
      %p383 = scmp.lt.s32.totalorder %s20, 1
      %s384 = scalar_select %p383, %s20, 1
      %p385 = scmp.lt.s32.totalorder %s382, 15
      %s386 = scalar_select %p385, %s382, 15
      %s387 = smul.addr %s386, 2
      %s388 = smul.addr %s384, 32
      %s389 = sadd.s32 %s387, %s388
      %s390 = smul.addr %s389, 4
      %s391 = scalar_lea.vmem %s5, %s390
      %s392 = smul.u32 8, %s21
      %v396 = vld [vmem:[%s360] sm:$0xff]
      %v397 = vld [vmem:[%s360 + $0x8] sm:$0xff]
      %v398 = vld [vmem:[%s377] sm:$0xff]
      %v399 = vld [vmem:[%s377 + $0x8] sm:$0xff]
      %p400 = scmp.gt.s32.totalorder %s21, 0
      %s401 = scalar_select %p400, 1.0, 0.0
      %v402 = vstv %s401
      %v403 = vmul.f32 %v396, %v402
      %v404 = vmul.f32 %v397, %v402
      %p405 = scmp.lt.s32.totalorder %s21, 1
      %s406 = scalar_select %p405, 1.0, 0.0
      %v407 = vstv %s406
      %v408 = vmul.f32 %v398, %v407
      %v409 = vmul.f32 %v399, %v407
      %v410 = vpack.c.bf16 %v404, %v403
      %v411 = vld [vmem:[%s346] sm:$0xff]
      %v412 = vld [vmem:[%s346 + $0x8] sm:$0xff]
      %v413 = vld [vmem:[%s346 + $0x10] sm:$0xff]
      %v414 = vld [vmem:[%s346 + $0x18] sm:$0xff]
      %v415 = vld [vmem:[%s346 + $0x20] sm:$0xff]
      %v416 = vld [vmem:[%s346 + $0x28] sm:$0xff]
      %v417 = vld [vmem:[%s346 + $0x30] sm:$0xff]
      %v418 = vld [vmem:[%s346 + $0x38] sm:$0xff]
      %v419 = vld [vmem:[%s346 + $0x40] sm:$0xff]
      %v420 = vld [vmem:[%s346 + $0x48] sm:$0xff]
      %v421 = vld [vmem:[%s346 + $0x50] sm:$0xff]
      %v422 = vld [vmem:[%s346 + $0x58] sm:$0xff]
      %v423 = vld [vmem:[%s346 + $0x60] sm:$0xff]
      %v424 = vld [vmem:[%s346 + $0x68] sm:$0xff]
      %v425 = vld [vmem:[%s346 + $0x70] sm:$0xff]
      %v426 = vld [vmem:[%s346 + $0x78] sm:$0xff]
      %v427 = vpack.c.bf16 %v412, %v411
      %v428 = vpack.c.bf16 %v414, %v413
      %v429 = vpack.c.bf16 %v416, %v415
      %v430 = vpack.c.bf16 %v418, %v417
      %v431 = vpack.c.bf16 %v420, %v419
      %v432 = vpack.c.bf16 %v422, %v421
      %v433 = vpack.c.bf16 %v424, %v423
      %v434 = vpack.c.bf16 %v426, %v425
      %v435 = vpack.c.bf16 %v409, %v408
      %v437 = vshrl.u32 %v410, 16
      %v439 = vrot.slane %v437, 7
      %v440 = vshll.u32 %v410, 16
      %v442 = vor.u32 %v439, %v440
      %vm445 = vsmask.f32 256
      %v447 = vshrl.u32 %v427, 16
      %v449 = vrot.slane %v447, 7
      %v450 = vshll.u32 %v427, 16
      %v452 = vor.u32 %v449, %v450
      %v454 = vshrl.u32 %v428, 16
      %v456 = vrot.slane %v454, 7
      %v457 = vshll.u32 %v428, 16
      %v459 = vor.u32 %v456, %v457
      %v460 = vsel %vm445, %v449, %v459
      %v462 = vshrl.u32 %v429, 16
      %v464 = vrot.slane %v462, 7
      %v465 = vshll.u32 %v429, 16
      %v467 = vor.u32 %v464, %v465
      %v468 = vsel %vm445, %v456, %v467
      %v470 = vshrl.u32 %v430, 16
      %v472 = vrot.slane %v470, 7
      %v473 = vshll.u32 %v430, 16
      %v475 = vor.u32 %v472, %v473
      %v476 = vsel %vm445, %v464, %v475
      %v478 = vshrl.u32 %v431, 16
      %v480 = vrot.slane %v478, 7
      %v481 = vshll.u32 %v431, 16
      %v483 = vor.u32 %v480, %v481
      %v484 = vsel %vm445, %v472, %v483
      %v486 = vshrl.u32 %v432, 16
      %v488 = vrot.slane %v486, 7
      %v489 = vshll.u32 %v432, 16
      %v491 = vor.u32 %v488, %v489
      %v492 = vsel %vm445, %v480, %v491
      %v494 = vshrl.u32 %v433, 16
      %v496 = vrot.slane %v494, 7
      %v497 = vshll.u32 %v433, 16
      %v499 = vor.u32 %v496, %v497
      %v500 = vsel %vm445, %v488, %v499
      %v502 = vshrl.u32 %v434, 16
      %v504 = vrot.slane %v502, 7
      %v505 = vshll.u32 %v434, 16
      %v507 = vor.u32 %v504, %v505
      %v508 = vsel %vm445, %v496, %v507
      %v519 = vshrl.u32 %v435, 16
      %v521 = vrot.slane %v519, 7
      %v522 = vshll.u32 %v435, 16
      %v524 = vor.u32 %v521, %v522
      %vm527 = vcmask 1040384
      %vm528 = vmand %vm527, %vm445
      %v529 = vsel %vm528, 0, %v442
      %v530 = vsel %vm528, %v439, %v452
      %v531 = vsel %vm528, %v504, %v524
      %v532 = vsel %vm528, %v521, 0
      %v533 = vlaneseq
      %v534 = vshrl.u32 %v533, 7
      %v535 = vadd.s32 %v534, 8
      %v536 = vadd.s32 %v534, 16
      %v537 = vadd.s32 %v534, 24
      %v538 = vadd.s32 %v534, 32
      %v539 = vadd.s32 %v534, 40
      %v540 = vadd.s32 %v534, 48
      %v541 = vadd.s32 %v534, 56
      %v542 = vadd.s32 %v534, 64
      %v543 = vadd.s32 %v534, 72
      %v544 = vadd.s32 %v534, 80
      %v545 = vadd.s32 %v534, 88
      %v546 = vadd.s32 %v534, 96
      %v547 = vadd.s32 %v534, 104
      %v548 = vadd.s32 %v534, 112
      %v549 = vadd.s32 %v534, 120
      %vm550 = vcmp.lt.s32.totalorder %v534, 0
      %v551 = vsub.s32 0, %v534
      %v552 = vsel %vm550, %v551, %v534
      %v553 = vshrl.u32 %v552, 4
      %v554 = vand.u32 %v552, 15
      %v555 = vsub.s32 0, %v554
      %v556 = vsel %vm550, %v555, %v554
      %vm557 = vcmp.lt.s32.totalorder %v535, 0
      %v558 = vsub.s32 0, %v535
      %v559 = vsel %vm557, %v558, %v535
      %v560 = vshrl.u32 %v559, 4
      %v561 = vand.u32 %v559, 15
      %v562 = vsub.s32 0, %v561
      %v563 = vsel %vm557, %v562, %v561
      %vm564 = vcmp.lt.s32.totalorder %v536, 0
      %v565 = vsub.s32 0, %v536
      %v566 = vsel %vm564, %v565, %v536
      %v567 = vshrl.u32 %v566, 4
      %v568 = vand.u32 %v566, 15
      %v569 = vsub.s32 0, %v568
      %v570 = vsel %vm564, %v569, %v568
      %vm571 = vcmp.lt.s32.totalorder %v537, 0
      %v572 = vsub.s32 0, %v537
      %v573 = vsel %vm571, %v572, %v537
      %v574 = vshrl.u32 %v573, 4
      %v575 = vand.u32 %v573, 15
      %v576 = vsub.s32 0, %v575
      %v577 = vsel %vm571, %v576, %v575
      %vm578 = vcmp.lt.s32.totalorder %v538, 0
      %v579 = vsub.s32 0, %v538
      %v580 = vsel %vm578, %v579, %v538
      %v581 = vshrl.u32 %v580, 4
      %v582 = vand.u32 %v580, 15
      %v583 = vsub.s32 0, %v582
      %v584 = vsel %vm578, %v583, %v582
      %vm585 = vcmp.lt.s32.totalorder %v539, 0
      %v586 = vsub.s32 0, %v539
      %v587 = vsel %vm585, %v586, %v539
      %v588 = vshrl.u32 %v587, 4
      %v589 = vand.u32 %v587, 15
      %v590 = vsub.s32 0, %v589
      %v591 = vsel %vm585, %v590, %v589
      %vm592 = vcmp.lt.s32.totalorder %v540, 0
      %v593 = vsub.s32 0, %v540
      %v594 = vsel %vm592, %v593, %v540
      %v595 = vshrl.u32 %v594, 4
      %v596 = vand.u32 %v594, 15
      %v597 = vsub.s32 0, %v596
      %v598 = vsel %vm592, %v597, %v596
      %vm599 = vcmp.lt.s32.totalorder %v541, 0
      %v600 = vsub.s32 0, %v541
      %v601 = vsel %vm599, %v600, %v541
      %v602 = vshrl.u32 %v601, 4
      %v603 = vand.u32 %v601, 15
      %v604 = vsub.s32 0, %v603
      %v605 = vsel %vm599, %v604, %v603
      %vm606 = vcmp.lt.s32.totalorder %v542, 0
      %v607 = vsub.s32 0, %v542
      %v608 = vsel %vm606, %v607, %v542
      %v609 = vshrl.u32 %v608, 4
      %v610 = vand.u32 %v608, 15
      %v611 = vsub.s32 0, %v610
      %v612 = vsel %vm606, %v611, %v610
      %vm613 = vcmp.lt.s32.totalorder %v543, 0
      %v614 = vsub.s32 0, %v543
      %v615 = vsel %vm613, %v614, %v543
      %v616 = vshrl.u32 %v615, 4
      %v617 = vand.u32 %v615, 15
      %v618 = vsub.s32 0, %v617
      %v619 = vsel %vm613, %v618, %v617
      %vm620 = vcmp.lt.s32.totalorder %v544, 0
      %v621 = vsub.s32 0, %v544
      %v622 = vsel %vm620, %v621, %v544
      %v623 = vshrl.u32 %v622, 4
      %v624 = vand.u32 %v622, 15
      %v625 = vsub.s32 0, %v624
      %v626 = vsel %vm620, %v625, %v624
      %vm627 = vcmp.lt.s32.totalorder %v545, 0
      %v628 = vsub.s32 0, %v545
      %v629 = vsel %vm627, %v628, %v545
      %v630 = vshrl.u32 %v629, 4
      %v631 = vand.u32 %v629, 15
      %v632 = vsub.s32 0, %v631
      %v633 = vsel %vm627, %v632, %v631
      %vm634 = vcmp.lt.s32.totalorder %v546, 0
      %v635 = vsub.s32 0, %v546
      %v636 = vsel %vm634, %v635, %v546
      %v637 = vshrl.u32 %v636, 4
      %v638 = vand.u32 %v636, 15
      %v639 = vsub.s32 0, %v638
      %v640 = vsel %vm634, %v639, %v638
      %vm641 = vcmp.lt.s32.totalorder %v547, 0
      %v642 = vsub.s32 0, %v547
      %v643 = vsel %vm641, %v642, %v547
      %v644 = vshrl.u32 %v643, 4
      %v645 = vand.u32 %v643, 15
      %v646 = vsub.s32 0, %v645
      %v647 = vsel %vm641, %v646, %v645
      %vm648 = vcmp.lt.s32.totalorder %v548, 0
      %v649 = vsub.s32 0, %v548
      %v650 = vsel %vm648, %v649, %v548
      %v651 = vshrl.u32 %v650, 4
      %v652 = vand.u32 %v650, 15
      %v653 = vsub.s32 0, %v652
      %v654 = vsel %vm648, %v653, %v652
      %vm655 = vcmp.lt.s32.totalorder %v549, 0
      %v656 = vsub.s32 0, %v549
      %v657 = vsel %vm655, %v656, %v549
      %v658 = vshrl.u32 %v657, 4
      %v659 = vand.u32 %v657, 15
      %v660 = vsub.s32 0, %v659
      %v661 = vsel %vm655, %v660, %v659
      %vm662 = vcmp.ne.s32.totalorder %v556, 0
      %vm663 = vcmp.ne.s32.totalorder %v563, 0
      %vm664 = vcmp.ne.s32.totalorder %v570, 0
      %vm665 = vcmp.ne.s32.totalorder %v577, 0
      %vm666 = vcmp.ne.s32.totalorder %v584, 0
      %vm667 = vcmp.ne.s32.totalorder %v591, 0
      %vm668 = vcmp.ne.s32.totalorder %v598, 0
      %vm669 = vcmp.ne.s32.totalorder %v605, 0
      %vm670 = vcmp.ne.s32.totalorder %v612, 0
      %vm671 = vcmp.ne.s32.totalorder %v619, 0
      %vm672 = vcmp.ne.s32.totalorder %v626, 0
      %vm673 = vcmp.ne.s32.totalorder %v633, 0
      %vm674 = vcmp.ne.s32.totalorder %v640, 0
      %vm675 = vcmp.ne.s32.totalorder %v647, 0
      %vm676 = vcmp.ne.s32.totalorder %v654, 0
      %vm677 = vcmp.ne.s32.totalorder %v661, 0
      %vm678 = vcmp.lt.s32.totalorder %v556, 0
      %vm679 = vcmp.lt.s32.totalorder %v563, 0
      %vm680 = vcmp.lt.s32.totalorder %v570, 0
      %vm681 = vcmp.lt.s32.totalorder %v577, 0
      %vm682 = vcmp.lt.s32.totalorder %v584, 0
      %vm683 = vcmp.lt.s32.totalorder %v591, 0
      %vm684 = vcmp.lt.s32.totalorder %v598, 0
      %vm685 = vcmp.lt.s32.totalorder %v605, 0
      %vm686 = vcmp.lt.s32.totalorder %v612, 0
      %vm687 = vcmp.lt.s32.totalorder %v619, 0
      %vm688 = vcmp.lt.s32.totalorder %v626, 0
      %vm689 = vcmp.lt.s32.totalorder %v633, 0
      %vm690 = vcmp.lt.s32.totalorder %v640, 0
      %vm691 = vcmp.lt.s32.totalorder %v647, 0
      %vm692 = vcmp.lt.s32.totalorder %v654, 0
      %vm693 = vcmp.lt.s32.totalorder %v661, 0
      %vm694 = vmand %vm678, %vm662
      %vm695 = vmand %vm679, %vm663
      %vm696 = vmand %vm680, %vm664
      %vm697 = vmand %vm681, %vm665
      %vm698 = vmand %vm682, %vm666
      %vm699 = vmand %vm683, %vm667
      %vm700 = vmand %vm684, %vm668
      %vm701 = vmand %vm685, %vm669
      %vm702 = vmand %vm686, %vm670
      %vm703 = vmand %vm687, %vm671
      %vm704 = vmand %vm688, %vm672
      %vm705 = vmand %vm689, %vm673
      %vm706 = vmand %vm690, %vm674
      %vm707 = vmand %vm691, %vm675
      %vm708 = vmand %vm692, %vm676
      %vm709 = vmand %vm693, %vm677
      %v710 = vadd.s32 %v556, 16
      %v711 = vadd.s32 %v563, 16
      %v712 = vadd.s32 %v570, 16
      %v713 = vadd.s32 %v577, 16
      %v714 = vadd.s32 %v584, 16
      %v715 = vadd.s32 %v591, 16
      %v716 = vadd.s32 %v598, 16
      %v717 = vadd.s32 %v605, 16
      %v718 = vadd.s32 %v612, 16
      %v719 = vadd.s32 %v619, 16
      %v720 = vadd.s32 %v626, 16
      %v721 = vadd.s32 %v633, 16
      %v722 = vadd.s32 %v640, 16
      %v723 = vadd.s32 %v647, 16
      %v724 = vadd.s32 %v654, 16
      %v725 = vadd.s32 %v661, 16
      %v726 = vsel %vm694, %v710, %v556
      %v727 = vsel %vm695, %v711, %v563
      %v728 = vsel %vm696, %v712, %v570
      %v729 = vsel %vm697, %v713, %v577
      %v730 = vsel %vm698, %v714, %v584
      %v731 = vsel %vm699, %v715, %v591
      %v732 = vsel %vm700, %v716, %v598
      %v733 = vsel %vm701, %v717, %v605
      %v734 = vsel %vm702, %v718, %v612
      %v735 = vsel %vm703, %v719, %v619
      %v736 = vsel %vm704, %v720, %v626
      %v737 = vsel %vm705, %v721, %v633
      %v738 = vsel %vm706, %v722, %v640
      %v739 = vsel %vm707, %v723, %v647
      %v740 = vsel %vm708, %v724, %v654
      %v741 = vsel %vm709, %v725, %v661
      %vm742 = vcmp.gt.s32.totalorder %v726, 0
      %vm743 = vcmp.gt.s32.totalorder %v727, 0
      %vm744 = vcmp.gt.s32.totalorder %v728, 0
      %vm745 = vcmp.gt.s32.totalorder %v729, 0
      %vm746 = vcmp.gt.s32.totalorder %v730, 0
      %vm747 = vcmp.gt.s32.totalorder %v731, 0
      %vm748 = vcmp.gt.s32.totalorder %v732, 0
      %vm749 = vcmp.gt.s32.totalorder %v733, 0
      %vm750 = vcmp.gt.s32.totalorder %v734, 0
      %vm751 = vcmp.gt.s32.totalorder %v735, 0
      %vm752 = vcmp.gt.s32.totalorder %v736, 0
      %vm753 = vcmp.gt.s32.totalorder %v737, 0
      %vm754 = vcmp.gt.s32.totalorder %v738, 0
      %vm755 = vcmp.gt.s32.totalorder %v739, 0
      %vm756 = vcmp.gt.s32.totalorder %v740, 0
      %vm757 = vcmp.gt.s32.totalorder %v741, 0
      %vm758 = vcmp.lt.s32.totalorder %v726, 15
      %vm759 = vcmp.lt.s32.totalorder %v727, 15
      %vm760 = vcmp.lt.s32.totalorder %v728, 15
      %vm761 = vcmp.lt.s32.totalorder %v729, 15
      %vm762 = vcmp.lt.s32.totalorder %v730, 15
      %vm763 = vcmp.lt.s32.totalorder %v731, 15
      %vm764 = vcmp.lt.s32.totalorder %v732, 15
      %vm765 = vcmp.lt.s32.totalorder %v733, 15
      %vm766 = vcmp.lt.s32.totalorder %v734, 15
      %vm767 = vcmp.lt.s32.totalorder %v735, 15
      %vm768 = vcmp.lt.s32.totalorder %v736, 15
      %vm769 = vcmp.lt.s32.totalorder %v737, 15
      %vm770 = vcmp.lt.s32.totalorder %v738, 15
      %vm771 = vcmp.lt.s32.totalorder %v739, 15
      %vm772 = vcmp.lt.s32.totalorder %v740, 15
      %vm773 = vcmp.lt.s32.totalorder %v741, 15
      %v774 = vsel %vm742, 1, 0
      %v775 = vsel %vm743, 1, 0
      %v776 = vsel %vm744, 1, 0
      %v777 = vsel %vm745, 1, 0
      %v778 = vsel %vm746, 1, 0
      %v779 = vsel %vm747, 1, 0
      %v780 = vsel %vm748, 1, 0
      %v781 = vsel %vm749, 1, 0
      %v782 = vsel %vm750, 1, 0
      %v783 = vsel %vm751, 1, 0
      %v784 = vsel %vm752, 1, 0
      %v785 = vsel %vm753, 1, 0
      %v786 = vsel %vm754, 1, 0
      %v787 = vsel %vm755, 1, 0
      %v788 = vsel %vm756, 1, 0
      %v789 = vsel %vm757, 1, 0
      %vm790 = vcmp.eq.s32.totalorder %v774, 1
      %vm791 = vcmp.eq.s32.totalorder %v775, 1
      %vm792 = vcmp.eq.s32.totalorder %v776, 1
      %vm793 = vcmp.eq.s32.totalorder %v777, 1
      %vm794 = vcmp.eq.s32.totalorder %v778, 1
      %vm795 = vcmp.eq.s32.totalorder %v779, 1
      %vm796 = vcmp.eq.s32.totalorder %v780, 1
      %vm797 = vcmp.eq.s32.totalorder %v781, 1
      %vm798 = vcmp.eq.s32.totalorder %v782, 1
      %vm799 = vcmp.eq.s32.totalorder %v783, 1
      %vm800 = vcmp.eq.s32.totalorder %v784, 1
      %vm801 = vcmp.eq.s32.totalorder %v785, 1
      %vm802 = vcmp.eq.s32.totalorder %v786, 1
      %vm803 = vcmp.eq.s32.totalorder %v787, 1
      %vm804 = vcmp.eq.s32.totalorder %v788, 1
      %vm805 = vcmp.eq.s32.totalorder %v789, 1
      %vm806 = vmpackc.low %vm790, %vm790
      %vm807 = vmpackc.low %vm791, %vm791
      %vm808 = vmpackc.low %vm792, %vm792
      %vm809 = vmpackc.low %vm793, %vm793
      %vm810 = vmpackc.low %vm794, %vm794
      %vm811 = vmpackc.low %vm795, %vm795
      %vm812 = vmpackc.low %vm796, %vm796
      %vm813 = vmpackc.low %vm797, %vm797
      %vm814 = vmpackc.low %vm798, %vm798
      %vm815 = vmpackc.low %vm799, %vm799
      %vm816 = vmpackc.low %vm800, %vm800
      %vm817 = vmpackc.low %vm801, %vm801
      %vm818 = vmpackc.low %vm802, %vm802
      %vm819 = vmpackc.low %vm803, %vm803
      %vm820 = vmpackc.low %vm804, %vm804
      %vm821 = vmpackc.low %vm805, %vm805
      %v822 = vsel %vm806, 65537, 0
      %v823 = vsel %vm807, 65537, 0
      %v824 = vsel %vm808, 65537, 0
      %v825 = vsel %vm809, 65537, 0
      %v826 = vsel %vm810, 65537, 0
      %v827 = vsel %vm811, 65537, 0
      %v828 = vsel %vm812, 65537, 0
      %v829 = vsel %vm813, 65537, 0
      %v830 = vsel %vm814, 65537, 0
      %v831 = vsel %vm815, 65537, 0
      %v832 = vsel %vm816, 65537, 0
      %v833 = vsel %vm817, 65537, 0
      %v834 = vsel %vm818, 65537, 0
      %v835 = vsel %vm819, 65537, 0
      %v836 = vsel %vm820, 65537, 0
      %v837 = vsel %vm821, 65537, 0
      %v838 = vunpack.c.l.b16 %v822
      %v839 = vunpack.c.l.b16 %v823
      %v840 = vunpack.c.l.b16 %v824
      %v841 = vunpack.c.l.b16 %v825
      %v842 = vunpack.c.l.b16 %v826
      %v843 = vunpack.c.l.b16 %v827
      %v844 = vunpack.c.l.b16 %v828
      %v845 = vunpack.c.l.b16 %v829
      %v846 = vunpack.c.l.b16 %v830
      %v847 = vunpack.c.l.b16 %v831
      %v848 = vunpack.c.l.b16 %v832
      %v849 = vunpack.c.l.b16 %v833
      %v850 = vunpack.c.l.b16 %v834
      %v851 = vunpack.c.l.b16 %v835
      %v852 = vunpack.c.l.b16 %v836
      %v853 = vunpack.c.l.b16 %v837
      %v854 = vpack.c.b16 %v839, %v838
      %v855 = vpack.c.b16 %v841, %v840
      %v856 = vpack.c.b16 %v843, %v842
      %v857 = vpack.c.b16 %v845, %v844
      %v858 = vpack.c.b16 %v847, %v846
      %v859 = vpack.c.b16 %v849, %v848
      %v860 = vpack.c.b16 %v851, %v850
      %v861 = vpack.c.b16 %v853, %v852
      %vm862 = vcmp.ne.s16.totalorder %v854, 0
      %vm863 = vcmp.ne.s16.totalorder %v855, 0
      %vm864 = vcmp.ne.s16.totalorder %v856, 0
      %vm865 = vcmp.ne.s16.totalorder %v857, 0
      %vm866 = vcmp.ne.s16.totalorder %v858, 0
      %vm867 = vcmp.ne.s16.totalorder %v859, 0
      %vm868 = vcmp.ne.s16.totalorder %v860, 0
      %vm869 = vcmp.ne.s16.totalorder %v861, 0
      %v870 = vsel %vm862, %v529, 0
      %v871 = vsel %vm863, %v530, 0
      %v872 = vsel %vm864, %v460, 0
      %v873 = vsel %vm865, %v468, 0
      %v874 = vsel %vm866, %v476, 0
      %v875 = vsel %vm867, %v484, 0
      %v876 = vsel %vm868, %v492, 0
      %v877 = vsel %vm869, %v500, 0
      %v878 = vsel %vm758, 1, 0
      %v879 = vsel %vm759, 1, 0
      %v880 = vsel %vm760, 1, 0
      %v881 = vsel %vm761, 1, 0
      %v882 = vsel %vm762, 1, 0
      %v883 = vsel %vm763, 1, 0
      %v884 = vsel %vm764, 1, 0
      %v885 = vsel %vm765, 1, 0
      %v886 = vsel %vm766, 1, 0
      %v887 = vsel %vm767, 1, 0
      %v888 = vsel %vm768, 1, 0
      %v889 = vsel %vm769, 1, 0
      %v890 = vsel %vm770, 1, 0
      %v891 = vsel %vm771, 1, 0
      %v892 = vsel %vm772, 1, 0
      %v893 = vsel %vm773, 1, 0
      %vm894 = vcmp.eq.s32.totalorder %v878, 1
      %vm895 = vcmp.eq.s32.totalorder %v879, 1
      %vm896 = vcmp.eq.s32.totalorder %v880, 1
      %vm897 = vcmp.eq.s32.totalorder %v881, 1
      %vm898 = vcmp.eq.s32.totalorder %v882, 1
      %vm899 = vcmp.eq.s32.totalorder %v883, 1
      %vm900 = vcmp.eq.s32.totalorder %v884, 1
      %vm901 = vcmp.eq.s32.totalorder %v885, 1
      %vm902 = vcmp.eq.s32.totalorder %v886, 1
      %vm903 = vcmp.eq.s32.totalorder %v887, 1
      %vm904 = vcmp.eq.s32.totalorder %v888, 1
      %vm905 = vcmp.eq.s32.totalorder %v889, 1
      %vm906 = vcmp.eq.s32.totalorder %v890, 1
      %vm907 = vcmp.eq.s32.totalorder %v891, 1
      %vm908 = vcmp.eq.s32.totalorder %v892, 1
      %vm909 = vcmp.eq.s32.totalorder %v893, 1
      %vm910 = vmpackc.low %vm894, %vm894
      %vm911 = vmpackc.low %vm895, %vm895
      %vm912 = vmpackc.low %vm896, %vm896
      %vm913 = vmpackc.low %vm897, %vm897
      %vm914 = vmpackc.low %vm898, %vm898
      %vm915 = vmpackc.low %vm899, %vm899
      %vm916 = vmpackc.low %vm900, %vm900
      %vm917 = vmpackc.low %vm901, %vm901
      %vm918 = vmpackc.low %vm902, %vm902
      %vm919 = vmpackc.low %vm903, %vm903
      %vm920 = vmpackc.low %vm904, %vm904
      %vm921 = vmpackc.low %vm905, %vm905
      %vm922 = vmpackc.low %vm906, %vm906
      %vm923 = vmpackc.low %vm907, %vm907
      %vm924 = vmpackc.low %vm908, %vm908
      %vm925 = vmpackc.low %vm909, %vm909
      %v926 = vsel %vm910, 65537, 0
      %v927 = vsel %vm911, 65537, 0
      %v928 = vsel %vm912, 65537, 0
      %v929 = vsel %vm913, 65537, 0
      %v930 = vsel %vm914, 65537, 0
      %v931 = vsel %vm915, 65537, 0
      %v932 = vsel %vm916, 65537, 0
      %v933 = vsel %vm917, 65537, 0
      %v934 = vsel %vm918, 65537, 0
      %v935 = vsel %vm919, 65537, 0
      %v936 = vsel %vm920, 65537, 0
      %v937 = vsel %vm921, 65537, 0
      %v938 = vsel %vm922, 65537, 0
      %v939 = vsel %vm923, 65537, 0
      %v940 = vsel %vm924, 65537, 0
      %v941 = vsel %vm925, 65537, 0
      %v942 = vunpack.c.l.b16 %v926
      %v943 = vunpack.c.l.b16 %v927
      %v944 = vunpack.c.l.b16 %v928
      %v945 = vunpack.c.l.b16 %v929
      %v946 = vunpack.c.l.b16 %v930
      %v947 = vunpack.c.l.b16 %v931
      %v948 = vunpack.c.l.b16 %v932
      %v949 = vunpack.c.l.b16 %v933
      %v950 = vunpack.c.l.b16 %v934
      %v951 = vunpack.c.l.b16 %v935
      %v952 = vunpack.c.l.b16 %v936
      %v953 = vunpack.c.l.b16 %v937
      %v954 = vunpack.c.l.b16 %v938
      %v955 = vunpack.c.l.b16 %v939
      %v956 = vunpack.c.l.b16 %v940
      %v957 = vunpack.c.l.b16 %v941
      %v958 = vpack.c.b16 %v943, %v942
      %v959 = vpack.c.b16 %v945, %v944
      %v960 = vpack.c.b16 %v947, %v946
      %v961 = vpack.c.b16 %v949, %v948
      %v962 = vpack.c.b16 %v951, %v950
      %v963 = vpack.c.b16 %v953, %v952
      %v964 = vpack.c.b16 %v955, %v954
      %v965 = vpack.c.b16 %v957, %v956
      %v966 = vrot.slane %v958, 7
      %v967 = vrot.slane %v959, 7
      %v968 = vsel %vm527, %v966, %v967
      %v969 = vrot.slane %v960, 7
      %v970 = vsel %vm527, %v967, %v969
      %v971 = vrot.slane %v961, 7
      %v972 = vsel %vm527, %v969, %v971
      %v973 = vrot.slane %v962, 7
      %v974 = vsel %vm527, %v971, %v973
      %v975 = vrot.slane %v963, 7
      %v976 = vsel %vm527, %v973, %v975
      %v977 = vrot.slane %v964, 7
      %v978 = vsel %vm527, %v975, %v977
      %v979 = vrot.slane %v965, 7
      %v980 = vsel %vm527, %v977, %v979
      %vm981 = vcmp.ne.s16.totalorder %v966, 0
      %vm982 = vcmp.ne.s16.totalorder %v968, 0
      %vm983 = vcmp.ne.s16.totalorder %v970, 0
      %vm984 = vcmp.ne.s16.totalorder %v972, 0
      %vm985 = vcmp.ne.s16.totalorder %v974, 0
      %vm986 = vcmp.ne.s16.totalorder %v976, 0
      %vm987 = vcmp.ne.s16.totalorder %v978, 0
      %vm988 = vcmp.ne.s16.totalorder %v980, 0
      %vm989 = vcmp.ne.s16.totalorder %v979, 0
      %v990 = vsel %vm981, %v529, 0
      %v991 = vsel %vm982, %v530, 0
      %v992 = vsel %vm983, %v460, 0
      %v993 = vsel %vm984, %v468, 0
      %v994 = vsel %vm985, %v476, 0
      %v995 = vsel %vm986, %v484, 0
      %v996 = vsel %vm987, %v492, 0
      %v997 = vsel %vm988, %v500, 0
      %v998 = vsel %vm989, %v508, 0
      %v999 = vsel %vm862, %v530, 0
      %v1000 = vsel %vm863, %v460, 0
      %v1001 = vsel %vm864, %v468, 0
      %v1002 = vsel %vm865, %v476, 0
      %v1003 = vsel %vm866, %v484, 0
      %v1004 = vsel %vm867, %v492, 0
      %v1005 = vsel %vm868, %v500, 0
      %v1006 = vsel %vm869, %v508, 0
      %v1007 = vsel %vm981, %v530, 0
      %v1008 = vsel %vm982, %v460, 0
      %v1009 = vsel %vm983, %v468, 0
      %v1010 = vsel %vm984, %v476, 0
      %v1011 = vsel %vm985, %v484, 0
      %v1012 = vsel %vm986, %v492, 0
      %v1013 = vsel %vm987, %v500, 0
      %v1014 = vsel %vm988, %v508, 0
      %v1015 = vsel %vm989, %v531, 0
      %v1016 = vsel %vm862, %v460, 0
      %v1017 = vsel %vm863, %v468, 0
      %v1018 = vsel %vm864, %v476, 0
      %v1019 = vsel %vm865, %v484, 0
      %v1020 = vsel %vm866, %v492, 0
      %v1021 = vsel %vm867, %v500, 0
      %v1022 = vsel %vm868, %v508, 0
      %v1023 = vsel %vm869, %v531, 0
      %v1024 = vsel %vm981, %v460, 0
      %v1025 = vsel %vm982, %v468, 0
      %v1026 = vsel %vm983, %v476, 0
      %v1027 = vsel %vm984, %v484, 0
      %v1028 = vsel %vm985, %v492, 0
      %v1029 = vsel %vm986, %v500, 0
      %v1030 = vsel %vm987, %v508, 0
      %v1031 = vsel %vm988, %v531, 0
      %v1032 = vsel %vm989, %v532, 0
      %vm1033 = vsmask.f32 7424
      %v1035 = vshrl.u32 %v529, 16
      %v1037 = vshll.u32 %v529, 16
      %v1039 = vrot.slane %v1037, 1
      %v1040 = vor.u32 %v1035, %v1039
      %v1042 = vshll.u32 %v530, 16
      %v1044 = vrot.slane %v1042, 1
      %v1045 = vsel %vm1033, %v1040, %v1044
      %v1046 = vshrl.u32 %v530, 16
      %v1048 = vor.u32 %v1046, %v1044
      %v1050 = vshll.u32 %v460, 16
      %v1052 = vrot.slane %v1050, 1
      %v1053 = vsel %vm1033, %v1048, %v1052
      %v1054 = vshrl.u32 %v460, 16
      %v1056 = vor.u32 %v1054, %v1052
      %v1058 = vshll.u32 %v468, 16
      %v1060 = vrot.slane %v1058, 1
      %v1061 = vsel %vm1033, %v1056, %v1060
      %v1062 = vshrl.u32 %v468, 16
      %v1064 = vor.u32 %v1062, %v1060
      %v1066 = vshll.u32 %v476, 16
      %v1068 = vrot.slane %v1066, 1
      %v1069 = vsel %vm1033, %v1064, %v1068
      %v1070 = vshrl.u32 %v476, 16
      %v1072 = vor.u32 %v1070, %v1068
      %v1074 = vshll.u32 %v484, 16
      %v1076 = vrot.slane %v1074, 1
      %v1077 = vsel %vm1033, %v1072, %v1076
      %v1078 = vshrl.u32 %v484, 16
      %v1080 = vor.u32 %v1078, %v1076
      %v1082 = vshll.u32 %v492, 16
      %v1084 = vrot.slane %v1082, 1
      %v1085 = vsel %vm1033, %v1080, %v1084
      %v1086 = vshrl.u32 %v492, 16
      %v1088 = vor.u32 %v1086, %v1084
      %v1090 = vshll.u32 %v500, 16
      %v1092 = vrot.slane %v1090, 1
      %v1093 = vsel %vm1033, %v1088, %v1092
      %v1094 = vshrl.u32 %v500, 16
      %v1096 = vor.u32 %v1094, %v1092
      %v1098 = vshll.u32 %v508, 16
      %v1100 = vrot.slane %v1098, 1
      %v1101 = vsel %vm1033, %v1096, %v1100
      %1102 = vrot.lane.b32.xlu0 %v1045, 3
      %v1103 = vpop.permute.xlu0 %1102
      %1104 = vrot.lane.b32.xlu0 %v1053, 3
      %v1105 = vpop.permute.xlu0 %1104
      %1106 = vrot.lane.b32.xlu0 %v1061, 3
      %v1107 = vpop.permute.xlu0 %1106
      %1108 = vrot.lane.b32.xlu0 %v1069, 3
      %v1109 = vpop.permute.xlu0 %1108
      %1110 = vrot.lane.b32.xlu0 %v1077, 3
      %v1111 = vpop.permute.xlu0 %1110
      %1112 = vrot.lane.b32.xlu0 %v1085, 3
      %v1113 = vpop.permute.xlu0 %1112
      %1114 = vrot.lane.b32.xlu0 %v1093, 3
      %v1115 = vpop.permute.xlu0 %1114
      %1116 = vrot.lane.b32.xlu0 %v1101, 3
      %v1117 = vpop.permute.xlu0 %1116
      %vm1127 = vcmask 1046528
      %v1128 = vrot.slane %v990, 1
      %v1129 = vrot.slane %v991, 1
      %v1130 = vsel %vm1127, %v1128, %v1129
      %v1131 = vrot.slane %v992, 1
      %v1132 = vsel %vm1127, %v1129, %v1131
      %v1133 = vrot.slane %v993, 1
      %v1134 = vsel %vm1127, %v1131, %v1133
      %v1135 = vrot.slane %v994, 1
      %v1136 = vsel %vm1127, %v1133, %v1135
      %v1137 = vrot.slane %v995, 1
      %v1138 = vsel %vm1127, %v1135, %v1137
      %v1139 = vrot.slane %v996, 1
      %v1140 = vsel %vm1127, %v1137, %v1139
      %v1141 = vrot.slane %v997, 1
      %v1142 = vsel %vm1127, %v1139, %v1141
      %v1143 = vrot.slane %v998, 1
      %v1144 = vsel %vm1127, %v1141, %v1143
      %1145 = vrot.lane.b32.xlu0 %v1130, 6
      %v1146 = vpop.permute.xlu0 %1145
      %1147 = vrot.lane.b32.xlu0 %v1132, 6
      %v1148 = vpop.permute.xlu0 %1147
      %1149 = vrot.lane.b32.xlu0 %v1134, 6
      %v1150 = vpop.permute.xlu0 %1149
      %1151 = vrot.lane.b32.xlu0 %v1136, 6
      %v1152 = vpop.permute.xlu0 %1151
      %1153 = vrot.lane.b32.xlu0 %v1138, 6
      %v1154 = vpop.permute.xlu0 %1153
      %1155 = vrot.lane.b32.xlu0 %v1140, 6
      %v1156 = vpop.permute.xlu0 %1155
      %1157 = vrot.lane.b32.xlu0 %v1142, 6
      %v1158 = vpop.permute.xlu0 %1157
      %1159 = vrot.lane.b32.xlu0 %v1144, 6
      %v1160 = vpop.permute.xlu0 %1159
      %1169 = vrot.lane.b32.xlu0 %v999, 9
      %v1170 = vpop.permute.xlu0 %1169
      %1171 = vrot.lane.b32.xlu0 %v1000, 9
      %v1172 = vpop.permute.xlu0 %1171
      %1173 = vrot.lane.b32.xlu0 %v1001, 9
      %v1174 = vpop.permute.xlu0 %1173
      %1175 = vrot.lane.b32.xlu0 %v1002, 9
      %v1176 = vpop.permute.xlu0 %1175
      %1177 = vrot.lane.b32.xlu0 %v1003, 9
      %v1178 = vpop.permute.xlu0 %1177
      %1179 = vrot.lane.b32.xlu0 %v1004, 9
      %v1180 = vpop.permute.xlu0 %1179
      %1181 = vrot.lane.b32.xlu0 %v1005, 9
      %v1182 = vpop.permute.xlu0 %1181
      %1183 = vrot.lane.b32.xlu0 %v1006, 9
      %v1184 = vpop.permute.xlu0 %1183
      %v1185 = vshrl.u32 %v508, 16
      %v1187 = vor.u32 %v1185, %v1100
      %v1189 = vshll.u32 %v531, 16
      %v1191 = vrot.slane %v1189, 1
      %v1192 = vsel %vm1033, %v1187, %v1191
      %1193 = vrot.lane.b32.xlu0 %v1053, 12
      %v1194 = vpop.permute.xlu0 %1193
      %1195 = vrot.lane.b32.xlu0 %v1061, 12
      %v1196 = vpop.permute.xlu0 %1195
      %1197 = vrot.lane.b32.xlu0 %v1069, 12
      %v1198 = vpop.permute.xlu0 %1197
      %1199 = vrot.lane.b32.xlu0 %v1077, 12
      %v1200 = vpop.permute.xlu0 %1199
      %1201 = vrot.lane.b32.xlu0 %v1085, 12
      %v1202 = vpop.permute.xlu0 %1201
      %1203 = vrot.lane.b32.xlu0 %v1093, 12
      %v1204 = vpop.permute.xlu0 %1203
      %1205 = vrot.lane.b32.xlu0 %v1101, 12
      %v1206 = vpop.permute.xlu0 %1205
      %1207 = vrot.lane.b32.xlu0 %v1192, 12
      %v1208 = vpop.permute.xlu0 %1207
      %v1218 = vrot.slane %v1007, 1
      %v1219 = vrot.slane %v1008, 1
      %v1220 = vsel %vm1127, %v1218, %v1219
      %v1221 = vrot.slane %v1009, 1
      %v1222 = vsel %vm1127, %v1219, %v1221
      %v1223 = vrot.slane %v1010, 1
      %v1224 = vsel %vm1127, %v1221, %v1223
      %v1225 = vrot.slane %v1011, 1
      %v1226 = vsel %vm1127, %v1223, %v1225
      %v1227 = vrot.slane %v1012, 1
      %v1228 = vsel %vm1127, %v1225, %v1227
      %v1229 = vrot.slane %v1013, 1
      %v1230 = vsel %vm1127, %v1227, %v1229
      %v1231 = vrot.slane %v1014, 1
      %v1232 = vsel %vm1127, %v1229, %v1231
      %v1233 = vrot.slane %v1015, 1
      %v1234 = vsel %vm1127, %v1231, %v1233
      %1235 = vrot.lane.b32.xlu0 %v1220, 15
      %v1236 = vpop.permute.xlu0 %1235
      %1237 = vrot.lane.b32.xlu0 %v1222, 15
      %v1238 = vpop.permute.xlu0 %1237
      %1239 = vrot.lane.b32.xlu0 %v1224, 15
      %v1240 = vpop.permute.xlu0 %1239
      %1241 = vrot.lane.b32.xlu0 %v1226, 15
      %v1242 = vpop.permute.xlu0 %1241
      %1243 = vrot.lane.b32.xlu0 %v1228, 15
      %v1244 = vpop.permute.xlu0 %1243
      %1245 = vrot.lane.b32.xlu0 %v1230, 15
      %v1246 = vpop.permute.xlu0 %1245
      %1247 = vrot.lane.b32.xlu0 %v1232, 15
      %v1248 = vpop.permute.xlu0 %1247
      %1249 = vrot.lane.b32.xlu0 %v1234, 15
      %v1250 = vpop.permute.xlu0 %1249
      %1259 = vrot.lane.b32.xlu0 %v1016, 18
      %v1260 = vpop.permute.xlu0 %1259
      %1261 = vrot.lane.b32.xlu0 %v1017, 18
      %v1262 = vpop.permute.xlu0 %1261
      %1263 = vrot.lane.b32.xlu0 %v1018, 18
      %v1264 = vpop.permute.xlu0 %1263
      %1265 = vrot.lane.b32.xlu0 %v1019, 18
      %v1266 = vpop.permute.xlu0 %1265
      %1267 = vrot.lane.b32.xlu0 %v1020, 18
      %v1268 = vpop.permute.xlu0 %1267
      %1269 = vrot.lane.b32.xlu0 %v1021, 18
      %v1270 = vpop.permute.xlu0 %1269
      %1271 = vrot.lane.b32.xlu0 %v1022, 18
      %v1272 = vpop.permute.xlu0 %1271
      %1273 = vrot.lane.b32.xlu0 %v1023, 18
      %v1274 = vpop.permute.xlu0 %1273
      %v1275 = vshrl.u32 %v531, 16
      %v1277 = vor.u32 %v1275, %v1191
      %v1279 = vshll.u32 %v532, 16
      %v1281 = vrot.slane %v1279, 1
      %v1282 = vsel %vm1033, %v1277, %v1281
      %1283 = vrot.lane.b32.xlu0 %v1061, 21
      %v1284 = vpop.permute.xlu0 %1283
      %1285 = vrot.lane.b32.xlu0 %v1069, 21
      %v1286 = vpop.permute.xlu0 %1285
      %1287 = vrot.lane.b32.xlu0 %v1077, 21
      %v1288 = vpop.permute.xlu0 %1287
      %1289 = vrot.lane.b32.xlu0 %v1085, 21
      %v1290 = vpop.permute.xlu0 %1289
      %1291 = vrot.lane.b32.xlu0 %v1093, 21
      %v1292 = vpop.permute.xlu0 %1291
      %1293 = vrot.lane.b32.xlu0 %v1101, 21
      %v1294 = vpop.permute.xlu0 %1293
      %1295 = vrot.lane.b32.xlu0 %v1192, 21
      %v1296 = vpop.permute.xlu0 %1295
      %1297 = vrot.lane.b32.xlu0 %v1282, 21
      %v1298 = vpop.permute.xlu0 %1297
      %v1308 = vrot.slane %v1024, 1
      %v1309 = vrot.slane %v1025, 1
      %v1310 = vsel %vm1127, %v1308, %v1309
      %v1311 = vrot.slane %v1026, 1
      %v1312 = vsel %vm1127, %v1309, %v1311
      %v1313 = vrot.slane %v1027, 1
      %v1314 = vsel %vm1127, %v1311, %v1313
      %v1315 = vrot.slane %v1028, 1
      %v1316 = vsel %vm1127, %v1313, %v1315
      %v1317 = vrot.slane %v1029, 1
      %v1318 = vsel %vm1127, %v1315, %v1317
      %v1319 = vrot.slane %v1030, 1
      %v1320 = vsel %vm1127, %v1317, %v1319
      %v1321 = vrot.slane %v1031, 1
      %v1322 = vsel %vm1127, %v1319, %v1321
      %v1323 = vrot.slane %v1032, 1
      %v1324 = vsel %vm1127, %v1321, %v1323
      %1325 = vrot.lane.b32.xlu0 %v1310, 24
      %v1326 = vpop.permute.xlu0 %1325
      %1327 = vrot.lane.b32.xlu0 %v1312, 24
      %v1328 = vpop.permute.xlu0 %1327
      %1329 = vrot.lane.b32.xlu0 %v1314, 24
      %v1330 = vpop.permute.xlu0 %1329
      %1331 = vrot.lane.b32.xlu0 %v1316, 24
      %v1332 = vpop.permute.xlu0 %1331
      %1333 = vrot.lane.b32.xlu0 %v1318, 24
      %v1334 = vpop.permute.xlu0 %1333
      %1335 = vrot.lane.b32.xlu0 %v1320, 24
      %v1336 = vpop.permute.xlu0 %1335
      %1337 = vrot.lane.b32.xlu0 %v1322, 24
      %v1338 = vpop.permute.xlu0 %1337
      %1339 = vrot.lane.b32.xlu0 %v1324, 24
      %v1340 = vpop.permute.xlu0 %1339
      %vm1341 = vcmask 23552
      %v1344 = vsel %vm1341, %v870, %v1103
      %v1347 = vsel %vm1341, %v871, %v1105
      %v1350 = vsel %vm1341, %v872, %v1107
      %v1353 = vsel %vm1341, %v873, %v1109
      %v1356 = vsel %vm1341, %v874, %v1111
      %v1359 = vsel %vm1341, %v875, %v1113
      %v1362 = vsel %vm1341, %v876, %v1115
      %v1365 = vsel %vm1341, %v877, %v1117
      %vm1366 = vcmask 48128
      %v1368 = vsel %vm1366, %v1344, %v1146
      %v1370 = vsel %vm1366, %v1347, %v1148
      %v1372 = vsel %vm1366, %v1350, %v1150
      %v1374 = vsel %vm1366, %v1353, %v1152
      %v1376 = vsel %vm1366, %v1356, %v1154
      %v1378 = vsel %vm1366, %v1359, %v1156
      %v1380 = vsel %vm1366, %v1362, %v1158
      %v1382 = vsel %vm1366, %v1365, %v1160
      %vm1383 = vcmask 72704
      %v1385 = vsel %vm1383, %v1368, %v1170
      %v1387 = vsel %vm1383, %v1370, %v1172
      %v1389 = vsel %vm1383, %v1372, %v1174
      %v1391 = vsel %vm1383, %v1374, %v1176
      %v1393 = vsel %vm1383, %v1376, %v1178
      %v1395 = vsel %vm1383, %v1378, %v1180
      %v1397 = vsel %vm1383, %v1380, %v1182
      %v1399 = vsel %vm1383, %v1382, %v1184
      %vm1400 = vcmask 97280
      %v1402 = vsel %vm1400, %v1385, %v1194
      %v1404 = vsel %vm1400, %v1387, %v1196
      %v1406 = vsel %vm1400, %v1389, %v1198
      %v1408 = vsel %vm1400, %v1391, %v1200
      %v1410 = vsel %vm1400, %v1393, %v1202
      %v1412 = vsel %vm1400, %v1395, %v1204
      %v1414 = vsel %vm1400, %v1397, %v1206
      %v1416 = vsel %vm1400, %v1399, %v1208
      %vm1417 = vcmask 121856
      %v1419 = vsel %vm1417, %v1402, %v1236
      %v1421 = vsel %vm1417, %v1404, %v1238
      %v1423 = vsel %vm1417, %v1406, %v1240
      %v1425 = vsel %vm1417, %v1408, %v1242
      %v1427 = vsel %vm1417, %v1410, %v1244
      %v1429 = vsel %vm1417, %v1412, %v1246
      %v1431 = vsel %vm1417, %v1414, %v1248
      %v1433 = vsel %vm1417, %v1416, %v1250
      %vm1434 = vcmask 146432
      %v1436 = vsel %vm1434, %v1419, %v1260
      %v1438 = vsel %vm1434, %v1421, %v1262
      %v1440 = vsel %vm1434, %v1423, %v1264
      %v1442 = vsel %vm1434, %v1425, %v1266
      %v1444 = vsel %vm1434, %v1427, %v1268
      %v1446 = vsel %vm1434, %v1429, %v1270
      %v1448 = vsel %vm1434, %v1431, %v1272
      %v1450 = vsel %vm1434, %v1433, %v1274
      %vm1451 = vcmask 171008
      %v1453 = vsel %vm1451, %v1436, %v1284
      %v1455 = vsel %vm1451, %v1438, %v1286
      %v1457 = vsel %vm1451, %v1440, %v1288
      %v1459 = vsel %vm1451, %v1442, %v1290
      %v1461 = vsel %vm1451, %v1444, %v1292
      %v1463 = vsel %vm1451, %v1446, %v1294
      %v1465 = vsel %vm1451, %v1448, %v1296
      %v1467 = vsel %vm1451, %v1450, %v1298
      %vm1468 = vcmask 195584
      %v1470 = vsel %vm1468, %v1453, %v1326
      %v1472 = vsel %vm1468, %v1455, %v1328
      %v1474 = vsel %vm1468, %v1457, %v1330
      %v1476 = vsel %vm1468, %v1459, %v1332
      %v1478 = vsel %vm1468, %v1461, %v1334
      %v1480 = vsel %vm1468, %v1463, %v1336
      %v1482 = vsel %vm1468, %v1465, %v1338
      %v1484 = vsel %vm1468, %v1467, %v1340
      %v1485 = vld [vmem:[%s3] sm:$0xf]
      %v1486 = vld [vmem:[%s3 + $0x4] sm:$0xf]
      %v1487 = vld [vmem:[%s3 + $0x8] sm:$0xf]
      %v1488 = vld [vmem:[%s3 + $0xc] sm:$0x3]
      %v1489 = vld [vmem:[%s4] sm:$0x1]
      %v1491 = vlaneseq
      %v1492 = vshrl.u32 %v1491, 7
      %v1493 = vsub.s32 0, %v1492
      %v1494 = vrot.slane %v1489, %v1493
      %v1500 = vunpack.c.l.b16 %v1485
      %v1501 = vunpack.c.l.b16 %v1486
      %v1502 = vunpack.c.l.b16 %v1487
      %v1503 = vunpack.c.l.b16 %v1488
      %v1504 = vpack.c.b16 %v1501, %v1500
      %v1505 = vpack.c.b16 %v1503, %v1502
      %vm1507 = vcmask 220160
      %v1508 = vsel %vm1507, %v1470, 0
      %v1510 = vsel %vm1507, %v1472, 0
      %v1512 = vsel %vm1507, %v1474, 0
      %v1514 = vsel %vm1507, %v1476, 0
      %v1516 = vsel %vm1507, %v1478, 0
      %v1518 = vsel %vm1507, %v1480, 0
      %v1520 = vsel %vm1507, %v1482, 0
      %v1522 = vsel %vm1507, %v1484, 0
      %vm1524 = vcmask 1044480
      %vm1525 = vcmask 1045504
      %v1526 = vsel %vm1524, 4294967295, 65535
      %v1527 = vsel %vm1525, %v1526, 0
      %v1529 = vand.u32 %v1505, %v1527
      %1531 = vmatprep.subr.bf16.mxu0 0
      %1532 = vmatpush1.bf16.msra.mxu0 %v1504
      %1533 = vmatprep.subr.bf16.mxu0 0
      %1534 = vmatpush1.bf16.msra.mxu0 %v1529
      %1535 = vmatprep.subr.bf16.mxu0 0
      %1536 = vmatpush1.bf16.msra.mxu0 0
      %1537 = vmatprep.subr.bf16.mxu0 0
      %1538 = vmatpush1.bf16.msra.mxu0 0
      %1539 = vmatprep.subr.bf16.mxu0 0
      %1540 = vmatpush1.bf16.msra.mxu0 0
      %1541 = vmatprep.subr.bf16.mxu0 0
      %1542 = vmatpush1.bf16.msra.mxu0 0
      %1543 = vmatprep.subr.bf16.mxu0 0
      %1544 = vmatpush1.bf16.msra.mxu0 0
      %1545 = vmatprep.subr.bf16.mxu0 0
      %1546 = vmatpush1.bf16.msra.mxu0 0
      %1547 = vmatprep.subr.bf16.mxu0 0
      %1548 = vmatpush1.bf16.msra.mxu0 0
      %1549 = vmatprep.subr.bf16.mxu0 0
      %1550 = vmatpush1.bf16.msra.mxu0 0
      %1551 = vmatprep.subr.bf16.mxu0 0
      %1552 = vmatpush1.bf16.msra.mxu0 0
      %1553 = vmatprep.subr.bf16.mxu0 0
      %1554 = vmatpush1.bf16.msra.mxu0 0
      %1555 = vmatprep.subr.bf16.mxu0 0
      %1556 = vmatpush1.bf16.msra.mxu0 0
      %1557 = vmatprep.subr.bf16.mxu0 0
      %1558 = vmatpush1.bf16.msra.mxu0 0
      %1559 = vmatprep.subr.bf16.mxu0 0
      %1560 = vmatpush1.bf16.msra.mxu0 0
      %1561 = vmatprep.subr.bf16.mxu0 0
      %1562 = vmatpush1.bf16.msra.mxu0 0
      %1563 = vmatprep.mubr.bf16.mxu0 0
      %1564 = vmatmul.mubr.bf16.gmra.mrb[0].mxu0 %v1508
      %v1565 = vpop.f32.mrb[0].mxu0
      %v1566 = vadd.f32 %v1494, %v1565
      %v1567 = vpop.f32.mrb[0].mxu0
      %v1568 = vpop.f32.mrb[0].mxu0
      %v1569 = vadd.f32 %v1494, %v1568
      %v1570 = vpop.f32.mrb[0].mxu0
      %1571 = vmatprep.mubr.bf16.mxu0 0
      %1572 = vmatmul.mubr.bf16.gmra.mrb[0].mxu0 %v1510
      %v1573 = vpop.f32.mrb[0].mxu0
      %v1574 = vadd.f32 %v1494, %v1573
      %v1575 = vpop.f32.mrb[0].mxu0
      %v1576 = vpop.f32.mrb[0].mxu0
      %v1577 = vadd.f32 %v1494, %v1576
      %v1578 = vpop.f32.mrb[0].mxu0
      %1579 = vmatprep.mubr.bf16.mxu0 0
      %1580 = vmatmul.mubr.bf16.gmra.mrb[0].mxu0 %v1512
      %v1581 = vpop.f32.mrb[0].mxu0
      %v1582 = vadd.f32 %v1494, %v1581
      %v1583 = vpop.f32.mrb[0].mxu0
      %v1584 = vpop.f32.mrb[0].mxu0
      %v1585 = vadd.f32 %v1494, %v1584
      %v1586 = vpop.f32.mrb[0].mxu0
      %1587 = vmatprep.mubr.bf16.mxu0 0
      %1588 = vmatmul.mubr.bf16.gmra.mrb[0].mxu0 %v1514
      %v1589 = vpop.f32.mrb[0].mxu0
      %v1590 = vadd.f32 %v1494, %v1589
      %v1591 = vpop.f32.mrb[0].mxu0
      %v1592 = vpop.f32.mrb[0].mxu0
      %v1593 = vadd.f32 %v1494, %v1592
      %v1594 = vpop.f32.mrb[0].mxu0
      %1595 = vmatprep.mubr.bf16.mxu0 0
      %1596 = vmatmul.mubr.bf16.gmra.mrb[0].mxu0 %v1516
      %v1597 = vpop.f32.mrb[0].mxu0
      %v1598 = vadd.f32 %v1494, %v1597
      %v1599 = vpop.f32.mrb[0].mxu0
      %v1600 = vpop.f32.mrb[0].mxu0
      %v1601 = vadd.f32 %v1494, %v1600
      %v1602 = vpop.f32.mrb[0].mxu0
      %1603 = vmatprep.mubr.bf16.mxu0 0
      %1604 = vmatmul.mubr.bf16.gmra.mrb[0].mxu0 %v1518
      %v1605 = vpop.f32.mrb[0].mxu0
      %v1606 = vadd.f32 %v1494, %v1605
      %v1607 = vpop.f32.mrb[0].mxu0
      %v1608 = vpop.f32.mrb[0].mxu0
      %v1609 = vadd.f32 %v1494, %v1608
      %v1610 = vpop.f32.mrb[0].mxu0
      %1611 = vmatprep.mubr.bf16.mxu0 0
      %1612 = vmatmul.mubr.bf16.gmra.mrb[0].mxu0 %v1520
      %v1613 = vpop.f32.mrb[0].mxu0
      %v1614 = vadd.f32 %v1494, %v1613
      %v1615 = vpop.f32.mrb[0].mxu0
      %v1616 = vpop.f32.mrb[0].mxu0
      %v1617 = vadd.f32 %v1494, %v1616
      %v1618 = vpop.f32.mrb[0].mxu0
      %1619 = vmatprep.mubr.bf16.mxu0 0
      %1620 = vmatmul.mubr.bf16.gmra.mrb[0].mxu0 %v1522
      %v1621 = vpop.f32.mrb[0].mxu0
      %v1622 = vadd.f32 %v1494, %v1621
      %v1623 = vpop.f32.mrb[0].mxu0
      %v1624 = vpop.f32.mrb[0].mxu0
      %v1625 = vadd.f32 %v1494, %v1624
      %v1626 = vpop.f32.mrb[0].mxu0
      %1627 = vdwg.mxu0
      %vm1628 = vcmp.ge.f32.partialorder %v1566, 0.0
      %vm1629 = vcmp.ge.f32.partialorder %v1569, 0.0
      %vm1630 = vcmp.ge.f32.partialorder %v1574, 0.0
      %vm1631 = vcmp.ge.f32.partialorder %v1577, 0.0
      %vm1632 = vcmp.ge.f32.partialorder %v1582, 0.0
      %vm1633 = vcmp.ge.f32.partialorder %v1585, 0.0
      %vm1634 = vcmp.ge.f32.partialorder %v1590, 0.0
      %vm1635 = vcmp.ge.f32.partialorder %v1593, 0.0
      %vm1636 = vcmp.ge.f32.partialorder %v1598, 0.0
      %vm1637 = vcmp.ge.f32.partialorder %v1601, 0.0
      %vm1638 = vcmp.ge.f32.partialorder %v1606, 0.0
      %vm1639 = vcmp.ge.f32.partialorder %v1609, 0.0
      %vm1640 = vcmp.ge.f32.partialorder %v1614, 0.0
      %vm1641 = vcmp.ge.f32.partialorder %v1617, 0.0
      %vm1642 = vcmp.ge.f32.partialorder %v1622, 0.0
      %vm1643 = vcmp.ge.f32.partialorder %v1625, 0.0
      %v1644 = vmul.f32 %v1566, 0.2
      %v1645 = vmul.f32 %v1569, 0.2
      %v1646 = vmul.f32 %v1574, 0.2
      %v1647 = vmul.f32 %v1577, 0.2
      %v1648 = vmul.f32 %v1582, 0.2
      %v1649 = vmul.f32 %v1585, 0.2
      %v1650 = vmul.f32 %v1590, 0.2
      %v1651 = vmul.f32 %v1593, 0.2
      %v1652 = vmul.f32 %v1598, 0.2
      %v1653 = vmul.f32 %v1601, 0.2
      %v1654 = vmul.f32 %v1606, 0.2
      %v1655 = vmul.f32 %v1609, 0.2
      %v1656 = vmul.f32 %v1614, 0.2
      %v1657 = vmul.f32 %v1617, 0.2
      %v1658 = vmul.f32 %v1622, 0.2
      %v1659 = vmul.f32 %v1625, 0.2
      %v1660 = vsel %vm1628, %v1566, %v1644
      %v1661 = vsel %vm1629, %v1569, %v1645
      %v1662 = vsel %vm1630, %v1574, %v1646
      %v1663 = vsel %vm1631, %v1577, %v1647
      %v1664 = vsel %vm1632, %v1582, %v1648
      %v1665 = vsel %vm1633, %v1585, %v1649
      %v1666 = vsel %vm1634, %v1590, %v1650
      %v1667 = vsel %vm1635, %v1593, %v1651
      %v1668 = vsel %vm1636, %v1598, %v1652
      %v1669 = vsel %vm1637, %v1601, %v1653
      %v1670 = vsel %vm1638, %v1606, %v1654
      %v1671 = vsel %vm1639, %v1609, %v1655
      %v1672 = vsel %vm1640, %v1614, %v1656
      %v1673 = vsel %vm1641, %v1617, %v1657
      %v1674 = vsel %vm1642, %v1622, %v1658
      %v1675 = vsel %vm1643, %v1625, %v1659
      %v1676 = vpack.c.bf16 %v1661, %v1660
      %v1677 = vpack.c.bf16 %v1663, %v1662
      %v1678 = vpack.c.bf16 %v1665, %v1664
      %v1679 = vpack.c.bf16 %v1667, %v1666
      %v1680 = vpack.c.bf16 %v1669, %v1668
      %v1681 = vpack.c.bf16 %v1671, %v1670
      %v1682 = vpack.c.bf16 %v1673, %v1672
      %v1683 = vpack.c.bf16 %v1675, %v1674
      %v1692 = vunpack.c.l.b16 %v1676
      %v1693 = vunpack.c.h.b16 %v1676
      %v1694 = vunpack.c.l.b16 %v1677
      %v1695 = vunpack.c.h.b16 %v1677
      %v1696 = vunpack.c.l.b16 %v1678
      %v1697 = vunpack.c.h.b16 %v1678
      %v1698 = vunpack.c.l.b16 %v1679
      %v1699 = vunpack.c.h.b16 %v1679
      %v1700 = vunpack.c.l.b16 %v1680
      %v1701 = vunpack.c.h.b16 %v1680
      %v1702 = vunpack.c.l.b16 %v1681
      %v1703 = vunpack.c.h.b16 %v1681
      %v1704 = vunpack.c.l.b16 %v1682
      %v1705 = vunpack.c.h.b16 %v1682
      %v1706 = vunpack.c.l.b16 %v1683
      %v1707 = vunpack.c.h.b16 %v1683
      %v1708 = vpack.c.b16 %v1692, %v1692
      %v1709 = vpack.c.b16 %v1693, %v1693
      %v1710 = vpack.c.b16 %v1694, %v1694
      %v1711 = vpack.c.b16 %v1695, %v1695
      %v1712 = vpack.c.b16 %v1696, %v1696
      %v1713 = vpack.c.b16 %v1697, %v1697
      %v1714 = vpack.c.b16 %v1698, %v1698
      %v1715 = vpack.c.b16 %v1699, %v1699
      %v1716 = vpack.c.b16 %v1700, %v1700
      %v1717 = vpack.c.b16 %v1701, %v1701
      %v1718 = vpack.c.b16 %v1702, %v1702
      %v1719 = vpack.c.b16 %v1703, %v1703
      %v1720 = vpack.c.b16 %v1704, %v1704
      %v1721 = vpack.c.b16 %v1705, %v1705
      %v1722 = vpack.c.b16 %v1706, %v1706
      %v1723 = vpack.c.b16 %v1707, %v1707
      %vm1740 = vcmask 60416
      %1741 = vst.msk [vmem:[%s391] sm:$0xf] %vm1740, %v1708
      %1742 = vst.msk [vmem:[%s391 + $0x4] sm:$0xf] %vm1740, %v1709
      %1743 = vst.msk [vmem:[%s391 + $0x8] sm:$0xf] %vm1740, %v1710
      %1744 = vst.msk [vmem:[%s391 + $0xc] sm:$0xf] %vm1740, %v1711
      %1745 = vst.msk [vmem:[%s391 + $0x10] sm:$0xf] %vm1740, %v1712
      %1746 = vst.msk [vmem:[%s391 + $0x14] sm:$0xf] %vm1740, %v1713
      %1747 = vst.msk [vmem:[%s391 + $0x18] sm:$0xf] %vm1740, %v1714
      %1748 = vst.msk [vmem:[%s391 + $0x1c] sm:$0xf] %vm1740, %v1715
      %1749 = vst.msk [vmem:[%s391 + $0x20] sm:$0xf] %vm1740, %v1716
      %1750 = vst.msk [vmem:[%s391 + $0x24] sm:$0xf] %vm1740, %v1717
      %1751 = vst.msk [vmem:[%s391 + $0x28] sm:$0xf] %vm1740, %v1718
      %1752 = vst.msk [vmem:[%s391 + $0x2c] sm:$0xf] %vm1740, %v1719
      %1753 = vst.msk [vmem:[%s391 + $0x30] sm:$0xf] %vm1740, %v1720
      %1754 = vst.msk [vmem:[%s391 + $0x34] sm:$0xf] %vm1740, %v1721
      %1755 = vst.msk [vmem:[%s391 + $0x38] sm:$0xf] %vm1740, %v1722
      %1756 = vst.msk [vmem:[%s391 + $0x3c] sm:$0xf] %vm1740, %v1723
      %s1757 = smul.u32 8, %s21
      %p1758 = scmp.lt.s32.totalorder %s20, 1
      %s1759 = scalar_select %p1758, %s20, 1
      %p1760 = scmp.lt.s32.totalorder %s1757, 15
      %s1761 = scalar_select %p1760, %s1757, 15
      %s1762 = smul.addr %s1761, 2
      %s1763 = smul.addr %s1759, 32
      %s1764 = sadd.s32 %s1762, %s1763
      %s1765 = smul.addr %s1764, 4
      %s1766 = scalar_lea.vmem %s5, %s1765
      // Predicated region
      $region41: #{tpu_custom_call.1} parent=39 // pred_check
        %p1767 = pneg %p190
      $region42: #{tpu_custom_call.1} parent=39 // pred_check_branch
        %1769 = sbr.rel (%p1767) target = $region44
      $region43: #{tpu_custom_call.1} parent=39 // pred_region
        %s1770 = smul.u32 8, %s21
      $region44: #{tpu_custom_call.1} parent=39 // pred_fallthru
        _
    $region40: #{tpu_custom_call.1} parent=5 // pred_fallthru
      _
    %p1771 = scmp.le.s32.totalorder 2, %s11
    // Predicated region
    $region45: #{tpu_custom_call.1} parent=5 // pred_check
      %p1772 = pneg %p1771
    $region46: #{tpu_custom_call.1} parent=5 // pred_check_branch
      %1774 = sbr.rel (%p1772) target = $region48
    $region47: #{tpu_custom_call.1} parent=5 // pred_region
      %s1775 = ssub.s32 %s11, 2
      // Predicated region
      $region49: #{tpu_custom_call.1} parent=47 // pred_check
        %p1776 = pneg %p196
      $region50: #{tpu_custom_call.1} parent=47 // pred_check_branch
        %1778 = sbr.rel (%p1776) target = $region52
      $region51: #{tpu_custom_call.1} parent=47 // pred_region
        %s1779 = smul.u32 8, %s23
        %p1780 = scmp.lt.s32.totalorder %s22, 1
        %s1781 = scalar_select %p1780, %s22, 1
        %p1782 = scmp.lt.s32.totalorder %s1779, 15
        %s1783 = scalar_select %p1782, %s1779, 15
        %s1784 = smul.addr %s1783, 2
        %s1785 = smul.addr %s1781, 32
        %s1786 = sadd.s32 %s1784, %s1785
        %s1787 = smul.addr %s1786, 4
        %s1788 = scalar_lea.vmem %s5, %s1787
      $region52: #{tpu_custom_call.1} parent=47 // pred_fallthru
        _
    $region48: #{tpu_custom_call.1} parent=5 // pred_fallthru
      _
  $region6: #{tpu_custom_call.1} parent=0 // loop_footer
    %s15 = sadd.s32 1, %s11
  $region7: #{tpu_custom_call.1} parent=0 // loop_footer_branch
    %10 = sbr.rel target = $region3
  $region8: #{tpu_custom_call.1} parent=0 // loop_exit
    _

</llo_original>
